<compile_context>
chip_gen: v6e
topology: v6e:2x2x1
jax: 0.10.0
libtpu: 0.0.40
codegen_flags: <defaults>
</compile_context>

<pallas_src>
import jax
import jax.numpy as jnp
from jax.experimental import pallas as pl
from jax.experimental.pallas import tpu as pltpu  # noqa: F401  (TPU backend)

# ----------------------------- configuration --------------------------------
BATCH = 2
IN_SHAPE = (4, 16, 16)                  # (C, H, W) -> NCHW input like PyTorch
IN_DIM = IN_SHAPE[0] * IN_SHAPE[1] * IN_SHAPE[2]   # 1024
HIDDEN = 32                             # args.hidden_dim
LATENT_CONT = 8                         # latent_spec['continuous']
DISC_DIMS = (4, 3)                      # latent_spec['discrete']
LATENT_DISC = sum(DISC_DIMS)            # 7
LATENT_DIM = LATENT_CONT + LATENT_DISC  # 15
TEMPERATURE = 0.67
EPS = 1e-12

LANES = 128                             # TPU lane width
B_PAD = 8                               # pad batch to a full f32 sublane tile
AL_OFF = 2 * LATENT_CONT                # alpha logits start lane in plane-1 (=16)
USE_BF16_WEIGHTS = True                 # bf16 storage for the two large weights

# layout of the consolidated small-parameter slab (rows x 256 lanes, f32)
R_WH = 0                                # rows  0:32  fused head weight (32,256)
R_WE2 = 32                              # rows 32:64  encoder fc2 (lanes 0:32)
R_WD2 = 64                              # rows 64:96  decoder fc2 (lanes 0:32)
R_WD1 = 96                              # rows 96:224 decoder fc1, 128 rows padded
R_BIAS = 224                            # rows 224:232 bias block: bh,be1,be2,bd1,bd2
WP_ROWS = 232


# ------------------------------- kernel -------------------------------------
def _vae_kernel(xin_ref, we1_ref, wdo_ref, wp_ref, bdo_ref, xrec_ref, sz_ref):
    f32 = jnp.float32
    w_dt = jnp.bfloat16 if USE_BF16_WEIGHTS else f32

    # ---- static views into the consolidated parameter slab (free) ----
    wh = wp_ref[R_WH:R_WH + HIDDEN, :]                    # (32, 256) fused heads
    we2 = wp_ref[R_WE2:R_WE2 + HIDDEN, 0:HIDDEN]          # (32, 32)
    wd2 = wp_ref[R_WD2:R_WD2 + HIDDEN, 0:HIDDEN]          # (32, 32)
    wd1 = wp_ref[R_WD1:R_WD1 + LANES, 0:HIDDEN]           # (128, 32), rows>=15 zero
    bias = wp_ref[R_BIAS:R_BIAS + 8, :]                   # (8, 256) bias block
    bh = bias[0:1, :]                                     # (1, 256)
    be1 = bias[1:2, 0:HIDDEN]
    be2 = bias[2:3, 0:HIDDEN]
    bd1 = bias[3:4, 0:HIDDEN]
    bd2 = bias[4:5, 0:HIDDEN]

    # ---- encoder ----
    x = xin_ref[:, 0:IN_DIM]                              # (8, 1024) f32
    noise = xin_ref[:, IN_DIM:IN_DIM + LANES]             # (8, 128): eps | unif
    # bf16 x bf16 MXU dot, f32 accumulation (no in-kernel weight up-cast)
    h = jnp.maximum(
        jnp.dot(x.astype(w_dt), we1_ref[...], preferred_element_type=f32) + be1, 0.0)
    h = jnp.maximum(jnp.dot(h, we2, preferred_element_type=f32) + be2, 0.0)

    # one fused head matmul (N=256): plane-1 = mu|logvar|alpha, plane-2 = logvar|alpha
    heads = jnp.dot(h, wh, preferred_element_type=f32) + bh
    p1 = heads[:, 0:LANES]      # lanes 0:8 mu | 8:16 logvar | 16:23 alpha | rest 0
    p2 = heads[:, LANES:]       # lanes 0:8 logvar | 8:15 alpha logits | rest 0

    lane = jax.lax.broadcasted_iota(jnp.int32, (B_PAD, LANES), 1)
    neg = jnp.float32(-1e30)

    def group_softmax(logits, start):
        """Masked per-group softmax over full 128-lane vregs (no slicing)."""
        out = jnp.zeros_like(logits)
        off = start
        for d in DISC_DIMS:
            m = (lane >= off) & (lane < off + d)
            gmax = jnp.max(jnp.where(m, logits, neg), axis=1, keepdims=True)
            e = jnp.where(m, jnp.exp(logits - gmax), 0.0)
            gsum = jnp.sum(e, axis=1, keepdims=True)
            # divide moved onto the EUP slot (rows sum to 1 +/- ~1e-3, ok for sampling)
            out = out + e * pl.reciprocal(gsum, approx=True)
            off += d
        return out

    # alphas = per-group softmax of alpha logits; stats slab = mu|logvar|alphas
    alphas = group_softmax(p1, AL_OFF)
    sz_ref[:, 0:LANES] = jnp.where(lane < AL_OFF, p1, alphas)

    # ---- reparameterize (training mode) ----
    # continuous: z = mu + exp(0.5*logvar) * eps   (valid at lanes 0:8)
    z_cont = p1 + jnp.exp(0.5 * p2) * noise
    # discrete: gumbel-softmax. softmax((log softmax(a)+g)/T) == softmax((a+g)/T)
    # (per-group constants cancel), so we feed raw plane-2 logits directly and
    # skip the second head softmax + log pass entirely (EPS term is negligible).
    u = jnp.clip(noise, EPS, 1.0 - 1e-7)
    gumbel = -jnp.log(-jnp.log(u + EPS) + EPS)
    z_disc = group_softmax((p2 + gumbel) / TEMPERATURE, LATENT_CONT)

    z = jnp.where(lane < LATENT_CONT, z_cont, z_disc)     # lanes >=15 are zero
    sz_ref[:, LANES:2 * LANES] = z

    # ---- decoder ----
    # wd1 is padded to 128 rows (rows >= 15 zero) so the full z slab feeds it.
    hd = jnp.maximum(jnp.dot(z, wd1, preferred_element_type=f32) + bd1, 0.0)
    hd = jnp.maximum(jnp.dot(hd, wd2, preferred_element_type=f32) + bd2, 0.0)
    x_logits = jnp.dot(hd.astype(w_dt), wdo_ref[...],
                       preferred_element_type=f32) + bdo_ref[...]
    xrec_ref[...] = jax.nn.sigmoid(x_logits)              # Bernoulli x_dist -> probs


# ------------------------------- params -------------------------------------
def init_params(key):
    """Deterministic synthetic parameters (natural shapes, like the torch module)."""
    ks = jax.random.split(key, 8)
    s = 0.05
    f32 = jnp.float32
    return {
        # encoder
        "we1": jax.random.normal(ks[0], (IN_DIM, HIDDEN), f32) * s,
        "be1": jnp.zeros((1, HIDDEN), f32),
        "we2": jax.random.normal(ks[1], (HIDDEN, HIDDEN), f32) * s,
        "be2": jnp.zeros((1, HIDDEN), f32),
        "wmu": jax.random.normal(ks[2], (HIDDEN, LATENT_CONT), f32) * s,
        "bmu": jnp.zeros((1, LATENT_CONT), f32),
        "wlv": jax.random.normal(ks[3], (HIDDEN, LATENT_CONT), f32) * s,
        "blv": jnp.zeros((1, LATENT_CONT), f32),
        "wal": jax.random.normal(ks[4], (HIDDEN, LATENT_DISC), f32) * s,
        "bal": jnp.zeros((1, LATENT_DISC), f32),
        # decoder
        "wd1": jax.random.normal(ks[5], (LATENT_DIM, HIDDEN), f32) * s,
        "bd1": jnp.zeros((1, HIDDEN), f32),
        "wd2": jax.random.normal(ks[6], (HIDDEN, HIDDEN), f32) * s,
        "bd2": jnp.zeros((1, HIDDEN), f32),
        "wdo": jax.random.normal(ks[7], (HIDDEN, IN_DIM), f32) * s,
        "bdo": jnp.zeros((1, IN_DIM), f32),
    }


def prepare_params(params):
    """One-time packing of parameters into kernel layout (off the per-call path)."""
    f32 = jnp.float32

    # fused head weight/bias: plane-1 = mu | logvar | alpha, plane-2 = logvar | alpha
    wh = jnp.zeros((HIDDEN, 2 * LANES), f32)
    wh = wh.at[:, 0:LATENT_CONT].set(params["wmu"])
    wh = wh.at[:, LATENT_CONT:AL_OFF].set(params["wlv"])
    wh = wh.at[:, AL_OFF:AL_OFF + LATENT_DISC].set(params["wal"])
    wh = wh.at[:, LANES:LANES + LATENT_CONT].set(params["wlv"])
    wh = wh.at[:, LANES + LATENT_CONT:LANES + LATENT_DIM].set(params["wal"])

    bh = jnp.zeros((1, 2 * LANES), f32)
    bh = bh.at[:, 0:LATENT_CONT].set(params["bmu"])
    bh = bh.at[:, LATENT_CONT:AL_OFF].set(params["blv"])
    bh = bh.at[:, AL_OFF:AL_OFF + LATENT_DISC].set(params["bal"])
    bh = bh.at[:, LANES:LANES + LATENT_CONT].set(params["blv"])
    bh = bh.at[:, LANES + LATENT_CONT:LANES + LATENT_DIM].set(params["bal"])

    # consolidated small-parameter slab (one DMA instead of seven)
    wp = jnp.zeros((WP_ROWS, 2 * LANES), f32)
    wp = wp.at[R_WH:R_WH + HIDDEN, :].set(wh)
    wp = wp.at[R_WE2:R_WE2 + HIDDEN, 0:HIDDEN].set(params["we2"])
    wp = wp.at[R_WD2:R_WD2 + HIDDEN, 0:HIDDEN].set(params["wd2"])
    wp = wp.at[R_WD1:R_WD1 + LATENT_DIM, 0:HIDDEN].set(params["wd1"])
    wp = wp.at[R_BIAS, :].set(bh[0])
    wp = wp.at[R_BIAS + 1, 0:HIDDEN].set(params["be1"][0])
    wp = wp.at[R_BIAS + 2, 0:HIDDEN].set(params["be2"][0])
    wp = wp.at[R_BIAS + 3, 0:HIDDEN].set(params["bd1"][0])
    wp = wp.at[R_BIAS + 4, 0:HIDDEN].set(params["bd2"][0])

    w_dtype = jnp.bfloat16 if USE_BF16_WEIGHTS else f32
    return {
        "we1": params["we1"].astype(w_dtype),   # 1024x32  (dominant DMA bytes)
        "wdo": params["wdo"].astype(w_dtype),   # 32x1024  (dominant DMA bytes)
        "wp": wp,                               # 232x256 f32 small-param slab
        "bdo": params["bdo"].astype(f32),       # 1x1024
    }


# ------------------------------- wrapper -------------------------------------
@jax.jit
def vae_forward(x, eps, unif, packed):
    B = x.shape[0]
    f32 = jnp.float32

    # per-call packing: only the activation slab (x | eps | unif), batch padded to 8
    row = jnp.concatenate(
        [x.reshape(B, -1).astype(f32), eps.astype(f32), unif.astype(f32)], axis=1)
    xin = jnp.zeros((B_PAD, IN_DIM + LANES), f32)
    xin = xin.at[:B, :IN_DIM + LATENT_DIM].set(row)

    # Single-block call: no grid, whole arrays resident in VMEM (default specs).
    xrec, sz = pl.pallas_call(
        _vae_kernel,
        out_shape=(
            jax.ShapeDtypeStruct((B_PAD, IN_DIM), f32),     # x_recon (lane-dense)
            jax.ShapeDtypeStruct((B_PAD, 2 * LANES), f32),  # stats | latent-sample
        ),
    )(xin, packed["we1"], packed["wdo"], packed["wp"], packed["bdo"])

    # --- unpack lane-dense slabs back into the module's output structure ---
    stats = sz[:B, 0:LANES]
    mu = stats[:, 0:LATENT_CONT]
    logvar = stats[:, LATENT_CONT:AL_OFF]
    alphas_list = []
    off = AL_OFF
    for d in DISC_DIMS:
        alphas_list.append(stats[:, off:off + d])
        off += d
    latent_sample = sz[:B, LANES:LANES + LATENT_DIM]
    x_stats = xrec[:B].reshape((B,) + IN_SHAPE)            # back to NCHW

    latent_stats = {"continuous": (mu, logvar), "discrete": alphas_list}
    flow_output = {"log_det_jacobian": None, "x_flow": None}
    # TODO(synk): eval-mode branches (mu passthrough, argmax one-hot) and the
    # flow prior are not part of this training-mode forward kernel.
    return x_stats, latent_sample, latent_stats, flow_output


# ------------------------------- main ----------------------------------------
if __name__ == "__main__":
    key = jax.random.PRNGKey(0)
    kx, keps, kunif, kp = jax.random.split(key, 4)

    x = jax.random.uniform(kx, (BATCH,) + IN_SHAPE, jnp.float32)
    # deterministic "randn_like" / "rand" draws for the reparameterization trick
    eps = jax.random.normal(keps, (BATCH, LATENT_CONT), jnp.float32)
    unif = jax.random.uniform(kunif, (BATCH, LATENT_DISC), jnp.float32)

    params = init_params(kp)
    packed = prepare_params(params)          # one-time packing, off the hot path

    x_stats, latent_sample, latent_stats, flow_output = vae_forward(x, eps, unif, packed)
    jax.block_until_ready((x_stats, latent_sample,
                           latent_stats["continuous"], latent_stats["discrete"]))

    assert x_stats.shape == (BATCH,) + IN_SHAPE
    assert latent_sample.shape == (BATCH, LATENT_DIM)
    assert latent_stats["continuous"][0].shape == (BATCH, LATENT_CONT)
    assert [a.shape for a in latent_stats["discrete"]] == [(BATCH, d) for d in DISC_DIMS]
    assert bool(jnp.all(jnp.isfinite(x_stats)))
    assert bool(jnp.all(jnp.isfinite(latent_sample)))
    print("KERNEL_OK")
</pallas_src>

<mosaic_0001>
module attributes {stable_mosaic.version = 11 : i64} {
  func.func @_vae_kernel(%arg0: memref<8x1152xf32, #tpu.memory_space<vmem>>, %arg1: memref<1024x32xbf16, #tpu.memory_space<vmem>>, %arg2: memref<32x1024xbf16, #tpu.memory_space<vmem>>, %arg3: memref<232x256xf32, #tpu.memory_space<vmem>>, %arg4: memref<1x1024xf32, #tpu.memory_space<vmem>>, %arg5: memref<8x1024xf32, #tpu.memory_space<vmem>>, %arg6: memref<8x256xf32, #tpu.memory_space<vmem>>) attributes {dimension_semantics = [], scalar_prefetch = 0 : i64, scratch_operands = 0 : i64, tpu.core_type = #tpu.core_type<tc>} {
    %c0 = arith.constant 0 : index
    %c0_0 = arith.constant 0 : index
    %0 = vector.load %arg3[%c0, %c0_0] : memref<232x256xf32, #tpu.memory_space<vmem>>, vector<32x256xf32>
    %c32 = arith.constant 32 : index
    %c0_1 = arith.constant 0 : index
    %1 = vector.load %arg3[%c32, %c0_1] : memref<232x256xf32, #tpu.memory_space<vmem>>, vector<32x32xf32>
    %c64 = arith.constant 64 : index
    %c0_2 = arith.constant 0 : index
    %2 = vector.load %arg3[%c64, %c0_2] : memref<232x256xf32, #tpu.memory_space<vmem>>, vector<32x32xf32>
    %c96 = arith.constant 96 : index
    %c0_3 = arith.constant 0 : index
    %3 = vector.load %arg3[%c96, %c0_3] : memref<232x256xf32, #tpu.memory_space<vmem>>, vector<128x32xf32>
    %c224 = arith.constant 224 : index
    %c0_4 = arith.constant 0 : index
    %4 = vector.load %arg3[%c224, %c0_4] : memref<232x256xf32, #tpu.memory_space<vmem>>, vector<8x256xf32>
    %5 = vector.extract_strided_slice %4 {offsets = [0, 0], sizes = [1, 256], strides = [1, 1]} : vector<8x256xf32> to vector<1x256xf32>
    %6 = vector.extract_strided_slice %4 {offsets = [1, 0], sizes = [1, 32], strides = [1, 1]} : vector<8x256xf32> to vector<1x32xf32>
    %7 = vector.extract_strided_slice %4 {offsets = [2, 0], sizes = [1, 32], strides = [1, 1]} : vector<8x256xf32> to vector<1x32xf32>
    %8 = vector.extract_strided_slice %4 {offsets = [3, 0], sizes = [1, 32], strides = [1, 1]} : vector<8x256xf32> to vector<1x32xf32>
    %9 = vector.extract_strided_slice %4 {offsets = [4, 0], sizes = [1, 32], strides = [1, 1]} : vector<8x256xf32> to vector<1x32xf32>
    %c0_5 = arith.constant 0 : index
    %c0_6 = arith.constant 0 : index
    %10 = vector.load %arg0[%c0_5, %c0_6] : memref<8x1152xf32, #tpu.memory_space<vmem>>, vector<8x1024xf32>
    %c0_7 = arith.constant 0 : index
    %c1024 = arith.constant 1024 : index
    %11 = vector.load %arg0[%c0_7, %c1024] : memref<8x1152xf32, #tpu.memory_space<vmem>>, vector<8x128xf32>
    %12 = arith.truncf %10 : vector<8x1024xf32> to vector<8x1024xbf16>
    %c0_8 = arith.constant 0 : index
    %c0_9 = arith.constant 0 : index
    %13 = vector.load %arg1[%c0_8, %c0_9] : memref<1024x32xbf16, #tpu.memory_space<vmem>>, vector<1024x32xbf16>
    %cst = arith.constant dense<0.000000e+00> : vector<8x32xf32>
    %14 = tpu.matmul %12, %13, %cst {dimension_numbers = #tpu.dot_dimension_numbers<[1], [0], [0], [1], [0, 0, 1, 1], [], []>} : vector<8x1024xbf16>, vector<1024x32xbf16>, vector<8x32xf32> -> vector<8x32xf32>
    %15 = vector.broadcast %6 : vector<1x32xf32> to vector<8x32xf32>
    %16 = arith.addf %14, %15 : vector<8x32xf32>
    %cst_10 = arith.constant 0.000000e+00 : f32
    %17 = vector.broadcast %cst_10 : f32 to vector<8x32xf32>
    %18 = arith.maximumf %16, %17 : vector<8x32xf32>
    %cst_11 = arith.constant dense<0.000000e+00> : vector<8x32xf32>
    %19 = tpu.matmul %18, %1, %cst_11 {dimension_numbers = #tpu.dot_dimension_numbers<[1], [0], [0], [1], [0, 0, 1, 1], [], []>} : vector<8x32xf32>, vector<32x32xf32>, vector<8x32xf32> -> vector<8x32xf32>
    %20 = vector.broadcast %7 : vector<1x32xf32> to vector<8x32xf32>
    %21 = arith.addf %19, %20 : vector<8x32xf32>
    %cst_12 = arith.constant 0.000000e+00 : f32
    %22 = vector.broadcast %cst_12 : f32 to vector<8x32xf32>
    %23 = arith.maximumf %21, %22 : vector<8x32xf32>
    %cst_13 = arith.constant dense<0.000000e+00> : vector<8x256xf32>
    %24 = tpu.matmul %23, %0, %cst_13 {dimension_numbers = #tpu.dot_dimension_numbers<[1], [0], [0], [1], [0, 0, 1, 1], [], []>} : vector<8x32xf32>, vector<32x256xf32>, vector<8x256xf32> -> vector<8x256xf32>
    %25 = vector.broadcast %5 : vector<1x256xf32> to vector<8x256xf32>
    %26 = arith.addf %24, %25 : vector<8x256xf32>
    %27 = vector.extract_strided_slice %26 {offsets = [0, 0], sizes = [8, 128], strides = [1, 1]} : vector<8x256xf32> to vector<8x128xf32>
    %28 = vector.extract_strided_slice %26 {offsets = [0, 128], sizes = [8, 128], strides = [1, 1]} : vector<8x256xf32> to vector<8x128xf32>
    %29 = tpu.iota {dimensions = array<i32: 1>} : vector<8x128xi32>
    %cst_14 = arith.constant 0.000000e+00 : f32
    %30 = vector.broadcast %cst_14 : f32 to vector<8x128xf32>
    %c16_i32 = arith.constant 16 : i32
    %31 = vector.broadcast %c16_i32 : i32 to vector<8x128xi32>
    %32 = arith.cmpi sge, %29, %31 : vector<8x128xi32>
    %c20_i32 = arith.constant 20 : i32
    %33 = vector.broadcast %c20_i32 : i32 to vector<8x128xi32>
    %34 = arith.cmpi slt, %29, %33 : vector<8x128xi32>
    %35 = arith.andi %32, %34 : vector<8x128xi1>
    %cst_15 = arith.constant -1.000000e+30 : f32
    %36 = vector.broadcast %cst_15 : f32 to vector<8x128xf32>
    %37 = arith.select %35, %27, %36 : vector<8x128xi1>, vector<8x128xf32>
    %cst_16 = arith.constant dense<0xFF800000> : vector<8xf32>
    %38 = vector.multi_reduction <maximumf>, %37, %cst_16 [1] : vector<8x128xf32> to vector<8xf32>
    %39 = vector.shape_cast %38 : vector<8xf32> to vector<8x1xf32>
    %40 = vector.broadcast %39 : vector<8x1xf32> to vector<8x128xf32>
    %41 = arith.subf %27, %40 : vector<8x128xf32>
    %42 = math.exp %41 : vector<8x128xf32>
    %cst_17 = arith.constant 0.000000e+00 : f32
    %43 = vector.broadcast %cst_17 : f32 to vector<8x128xf32>
    %44 = arith.select %35, %42, %43 : vector<8x128xi1>, vector<8x128xf32>
    %cst_18 = arith.constant dense<0.000000e+00> : vector<8xf32>
    %45 = vector.multi_reduction <add>, %44, %cst_18 [1] : vector<8x128xf32> to vector<8xf32>
    %46 = vector.shape_cast %45 : vector<8xf32> to vector<8x1xf32>
    %47 = tpu.reciprocal %46 {approx = true} : vector<8x1xf32> -> vector<8x1xf32>
    %48 = vector.broadcast %47 : vector<8x1xf32> to vector<8x128xf32>
    %49 = arith.mulf %44, %48 : vector<8x128xf32>
    %50 = arith.addf %30, %49 : vector<8x128xf32>
    %c20_i32_19 = arith.constant 20 : i32
    %51 = vector.broadcast %c20_i32_19 : i32 to vector<8x128xi32>
    %52 = arith.cmpi sge, %29, %51 : vector<8x128xi32>
    %c23_i32 = arith.constant 23 : i32
    %53 = vector.broadcast %c23_i32 : i32 to vector<8x128xi32>
    %54 = arith.cmpi slt, %29, %53 : vector<8x128xi32>
    %55 = arith.andi %52, %54 : vector<8x128xi1>
    %cst_20 = arith.constant -1.000000e+30 : f32
    %56 = vector.broadcast %cst_20 : f32 to vector<8x128xf32>
    %57 = arith.select %55, %27, %56 : vector<8x128xi1>, vector<8x128xf32>
    %cst_21 = arith.constant dense<0xFF800000> : vector<8xf32>
    %58 = vector.multi_reduction <maximumf>, %57, %cst_21 [1] : vector<8x128xf32> to vector<8xf32>
    %59 = vector.shape_cast %58 : vector<8xf32> to vector<8x1xf32>
    %60 = vector.broadcast %59 : vector<8x1xf32> to vector<8x128xf32>
    %61 = arith.subf %27, %60 : vector<8x128xf32>
    %62 = math.exp %61 : vector<8x128xf32>
    %cst_22 = arith.constant 0.000000e+00 : f32
    %63 = vector.broadcast %cst_22 : f32 to vector<8x128xf32>
    %64 = arith.select %55, %62, %63 : vector<8x128xi1>, vector<8x128xf32>
    %cst_23 = arith.constant dense<0.000000e+00> : vector<8xf32>
    %65 = vector.multi_reduction <add>, %64, %cst_23 [1] : vector<8x128xf32> to vector<8xf32>
    %66 = vector.shape_cast %65 : vector<8xf32> to vector<8x1xf32>
    %67 = tpu.reciprocal %66 {approx = true} : vector<8x1xf32> -> vector<8x1xf32>
    %68 = vector.broadcast %67 : vector<8x1xf32> to vector<8x128xf32>
    %69 = arith.mulf %64, %68 : vector<8x128xf32>
    %70 = arith.addf %50, %69 : vector<8x128xf32>
    %c16_i32_24 = arith.constant 16 : i32
    %71 = vector.broadcast %c16_i32_24 : i32 to vector<8x128xi32>
    %72 = arith.cmpi slt, %29, %71 : vector<8x128xi32>
    %73 = arith.select %72, %27, %70 : vector<8x128xi1>, vector<8x128xf32>
    %c0_25 = arith.constant 0 : index
    %c0_26 = arith.constant 0 : index
    %74 = vector.load %arg6[%c0_25, %c0_26] : memref<8x256xf32, #tpu.memory_space<vmem>>, vector<8x128xf32>
    tpu.vector_store %arg6[%c0_25, %c0_26], %73 {strides = array<i32>} : memref<8x256xf32, #tpu.memory_space<vmem>>, vector<8x128xf32>,
    %cst_27 = arith.constant 5.000000e-01 : f32
    %75 = vector.broadcast %cst_27 : f32 to vector<8x128xf32>
    %76 = arith.mulf %75, %28 : vector<8x128xf32>
    %77 = math.exp %76 : vector<8x128xf32>
    %78 = arith.mulf %77, %11 : vector<8x128xf32>
    %79 = arith.addf %27, %78 : vector<8x128xf32>
    %cst_28 = arith.constant 9.99999996E-13 : f32
    %cst_29 = arith.constant 0.99999988 : f32
    %80 = vector.broadcast %cst_28 : f32 to vector<8x128xf32>
    %81 = arith.maximumf %80, %11 : vector<8x128xf32>
    %82 = vector.broadcast %cst_29 : f32 to vector<8x128xf32>
    %83 = arith.minimumf %82, %81 : vector<8x128xf32>
    %cst_30 = arith.constant 9.99999996E-13 : f32
    %84 = vector.broadcast %cst_30 : f32 to vector<8x128xf32>
    %85 = arith.addf %83, %84 : vector<8x128xf32>
    %86 = math.log %85 : vector<8x128xf32>
    %cst_31 = arith.constant 0.000000e+00 : f32
    %87 = vector.broadcast %cst_31 : f32 to vector<8x128xf32>
    %88 = arith.subf %87, %86 : vector<8x128xf32>
    %cst_32 = arith.constant 9.99999996E-13 : f32
    %89 = vector.broadcast %cst_32 : f32 to vector<8x128xf32>
    %90 = arith.addf %88, %89 : vector<8x128xf32>
    %91 = math.log %90 : vector<8x128xf32>
    %cst_33 = arith.constant 0.000000e+00 : f32
    %92 = vector.broadcast %cst_33 : f32 to vector<8x128xf32>
    %93 = arith.subf %92, %91 : vector<8x128xf32>
    %94 = arith.addf %28, %93 : vector<8x128xf32>
    %cst_34 = arith.constant 6.700000e-01 : f32
    %95 = vector.broadcast %cst_34 : f32 to vector<8x128xf32>
    %96 = arith.divf %94, %95 : vector<8x128xf32>
    %cst_35 = arith.constant 0.000000e+00 : f32
    %97 = vector.broadcast %cst_35 : f32 to vector<8x128xf32>
    %c8_i32 = arith.constant 8 : i32
    %98 = vector.broadcast %c8_i32 : i32 to vector<8x128xi32>
    %99 = arith.cmpi sge, %29, %98 : vector<8x128xi32>
    %c12_i32 = arith.constant 12 : i32
    %100 = vector.broadcast %c12_i32 : i32 to vector<8x128xi32>
    %101 = arith.cmpi slt, %29, %100 : vector<8x128xi32>
    %102 = arith.andi %99, %101 : vector<8x128xi1>
    %cst_36 = arith.constant -1.000000e+30 : f32
    %103 = vector.broadcast %cst_36 : f32 to vector<8x128xf32>
    %104 = arith.select %102, %96, %103 : vector<8x128xi1>, vector<8x128xf32>
    %cst_37 = arith.constant dense<0xFF800000> : vector<8xf32>
    %105 = vector.multi_reduction <maximumf>, %104, %cst_37 [1] : vector<8x128xf32> to vector<8xf32>
    %106 = vector.shape_cast %105 : vector<8xf32> to vector<8x1xf32>
    %107 = vector.broadcast %106 : vector<8x1xf32> to vector<8x128xf32>
    %108 = arith.subf %96, %107 : vector<8x128xf32>
    %109 = math.exp %108 : vector<8x128xf32>
    %cst_38 = arith.constant 0.000000e+00 : f32
    %110 = vector.broadcast %cst_38 : f32 to vector<8x128xf32>
    %111 = arith.select %102, %109, %110 : vector<8x128xi1>, vector<8x128xf32>
    %cst_39 = arith.constant dense<0.000000e+00> : vector<8xf32>
    %112 = vector.multi_reduction <add>, %111, %cst_39 [1] : vector<8x128xf32> to vector<8xf32>
    %113 = vector.shape_cast %112 : vector<8xf32> to vector<8x1xf32>
    %114 = tpu.reciprocal %113 {approx = true} : vector<8x1xf32> -> vector<8x1xf32>
    %115 = vector.broadcast %114 : vector<8x1xf32> to vector<8x128xf32>
    %116 = arith.mulf %111, %115 : vector<8x128xf32>
    %117 = arith.addf %97, %116 : vector<8x128xf32>
    %c12_i32_40 = arith.constant 12 : i32
    %118 = vector.broadcast %c12_i32_40 : i32 to vector<8x128xi32>
    %119 = arith.cmpi sge, %29, %118 : vector<8x128xi32>
    %c15_i32 = arith.constant 15 : i32
    %120 = vector.broadcast %c15_i32 : i32 to vector<8x128xi32>
    %121 = arith.cmpi slt, %29, %120 : vector<8x128xi32>
    %122 = arith.andi %119, %121 : vector<8x128xi1>
    %cst_41 = arith.constant -1.000000e+30 : f32
    %123 = vector.broadcast %cst_41 : f32 to vector<8x128xf32>
    %124 = arith.select %122, %96, %123 : vector<8x128xi1>, vector<8x128xf32>
    %cst_42 = arith.constant dense<0xFF800000> : vector<8xf32>
    %125 = vector.multi_reduction <maximumf>, %124, %cst_42 [1] : vector<8x128xf32> to vector<8xf32>
    %126 = vector.shape_cast %125 : vector<8xf32> to vector<8x1xf32>
    %127 = vector.broadcast %126 : vector<8x1xf32> to vector<8x128xf32>
    %128 = arith.subf %96, %127 : vector<8x128xf32>
    %129 = math.exp %128 : vector<8x128xf32>
    %cst_43 = arith.constant 0.000000e+00 : f32
    %130 = vector.broadcast %cst_43 : f32 to vector<8x128xf32>
    %131 = arith.select %122, %129, %130 : vector<8x128xi1>, vector<8x128xf32>
    %cst_44 = arith.constant dense<0.000000e+00> : vector<8xf32>
    %132 = vector.multi_reduction <add>, %131, %cst_44 [1] : vector<8x128xf32> to vector<8xf32>
    %133 = vector.shape_cast %132 : vector<8xf32> to vector<8x1xf32>
    %134 = tpu.reciprocal %133 {approx = true} : vector<8x1xf32> -> vector<8x1xf32>
    %135 = vector.broadcast %134 : vector<8x1xf32> to vector<8x128xf32>
    %136 = arith.mulf %131, %135 : vector<8x128xf32>
    %137 = arith.addf %117, %136 : vector<8x128xf32>
    %c8_i32_45 = arith.constant 8 : i32
    %138 = vector.broadcast %c8_i32_45 : i32 to vector<8x128xi32>
    %139 = arith.cmpi slt, %29, %138 : vector<8x128xi32>
    %140 = arith.select %139, %79, %137 : vector<8x128xi1>, vector<8x128xf32>
    %c0_46 = arith.constant 0 : index
    %c128 = arith.constant 128 : index
    %141 = vector.load %arg6[%c0_46, %c128] : memref<8x256xf32, #tpu.memory_space<vmem>>, vector<8x128xf32>
    tpu.vector_store %arg6[%c0_46, %c128], %140 {strides = array<i32>} : memref<8x256xf32, #tpu.memory_space<vmem>>, vector<8x128xf32>,
    %cst_47 = arith.constant dense<0.000000e+00> : vector<8x32xf32>
    %142 = tpu.matmul %140, %3, %cst_47 {dimension_numbers = #tpu.dot_dimension_numbers<[1], [0], [0], [1], [0, 0, 1, 1], [], []>} : vector<8x128xf32>, vector<128x32xf32>, vector<8x32xf32> -> vector<8x32xf32>
    %143 = vector.broadcast %8 : vector<1x32xf32> to vector<8x32xf32>
    %144 = arith.addf %142, %143 : vector<8x32xf32>
    %cst_48 = arith.constant 0.000000e+00 : f32
    %145 = vector.broadcast %cst_48 : f32 to vector<8x32xf32>
    %146 = arith.maximumf %144, %145 : vector<8x32xf32>
    %cst_49 = arith.constant dense<0.000000e+00> : vector<8x32xf32>
    %147 = tpu.matmul %146, %2, %cst_49 {dimension_numbers = #tpu.dot_dimension_numbers<[1], [0], [0], [1], [0, 0, 1, 1], [], []>} : vector<8x32xf32>, vector<32x32xf32>, vector<8x32xf32> -> vector<8x32xf32>
    %148 = vector.broadcast %9 : vector<1x32xf32> to vector<8x32xf32>
    %149 = arith.addf %147, %148 : vector<8x32xf32>
    %cst_50 = arith.constant 0.000000e+00 : f32
    %150 = vector.broadcast %cst_50 : f32 to vector<8x32xf32>
    %151 = arith.maximumf %149, %150 : vector<8x32xf32>
    %152 = arith.truncf %151 : vector<8x32xf32> to vector<8x32xbf16>
    %c0_51 = arith.constant 0 : index
    %c0_52 = arith.constant 0 : index
    %153 = vector.load %arg2[%c0_51, %c0_52] : memref<32x1024xbf16, #tpu.memory_space<vmem>>, vector<32x1024xbf16>
    %cst_53 = arith.constant dense<0.000000e+00> : vector<8x1024xf32>
    %154 = tpu.matmul %152, %153, %cst_53 {dimension_numbers = #tpu.dot_dimension_numbers<[1], [0], [0], [1], [0, 0, 1, 1], [], []>} : vector<8x32xbf16>, vector<32x1024xbf16>, vector<8x1024xf32> -> vector<8x1024xf32>
    %c0_54 = arith.constant 0 : index
    %c0_55 = arith.constant 0 : index
    %155 = vector.load %arg4[%c0_54, %c0_55] : memref<1x1024xf32, #tpu.memory_space<vmem>>, vector<1x1024xf32>
    %156 = vector.broadcast %155 : vector<1x1024xf32> to vector<8x1024xf32>
    %157 = arith.addf %154, %156 : vector<8x1024xf32>
    %158 = arith.negf %157 : vector<8x1024xf32>
    %159 = math.exp %158 : vector<8x1024xf32>
    %cst_56 = arith.constant 1.000000e+00 : f32
    %160 = vector.broadcast %cst_56 : f32 to vector<8x1024xf32>
    %161 = arith.addf %160, %159 : vector<8x1024xf32>
    %162 = arith.divf %160, %161 : vector<8x1024xf32>
    %c0_57 = arith.constant 0 : index
    %c0_58 = arith.constant 0 : index
    %163 = vector.load %arg5[%c0_57, %c0_58] : memref<8x1024xf32, #tpu.memory_space<vmem>>, vector<8x1024xf32>
    tpu.vector_store %arg5[%c0_57, %c0_58], %162 {strides = array<i32>} : memref<8x1024xf32, #tpu.memory_space<vmem>>, vector<8x1024xf32>,
    return
  }
}

</mosaic_0001>

<llo_original>
// kernel: vae_forward.1
$region0: #{vae_forward.1}
  #allocation0 [shape = 'u32[]', space=smem, size = 0x4, offset = 0x4, fixed_abs, tag = 'smem constant byte address 0x4 - core index']
  #allocation1 [shape = 'u32[144,128]{1,0:T(1,128)}', space=vmem, size = 0x12000, scoped, tag = 'internal scratch']
  %s0 = inlined_call_operand.vmem [shape: f32[8,1152], index: 0, kind: input, shape index: {}]
  %s1 = inlined_call_operand.vmem [shape: bf16[1024,32], index: 1, kind: input, shape index: {}]
  %s2 = inlined_call_operand.vmem [shape: bf16[32,1024], index: 2, kind: input, shape index: {}]
  %s3 = inlined_call_operand.vmem [shape: f32[232,256], index: 3, kind: input, shape index: {}]
  %s4 = inlined_call_operand.vmem [shape: f32[1,1024], index: 4, kind: input, shape index: {}]
  %s5 = inlined_call_operand.vmem [shape: f32[8,1024], index: 5, kind: output, shape index: {0}]
  %s6 = inlined_call_operand.vmem [shape: f32[8,256], index: 6, kind: output, shape index: {1}]
  %7 = xla_tuple %s5, %s6
  %s8 = sld [smem:[#allocation0]]
  $region38: #{vae_forward.1} parent=0
    _
  %s10 = ssub.s32 1, %s8
  %s11 = scalar_select 0, %s10, %s8
  // Predicated region
  $region2: #{vae_forward.1} parent=0 // pred_check
    _
  $region3: #{vae_forward.1} parent=0 // pred_check_branch
    %13 = sbr.rel (0) target = $region5
  $region4: #{vae_forward.1} parent=0 // pred_region
    _
  $region5: #{vae_forward.1} parent=0 // pred_fallthru
    _
  // Predicated region
  $region6: #{vae_forward.1} parent=0 // pred_check
    _
  $region7: #{vae_forward.1} parent=0 // pred_check_branch
    %15 = sbr.rel (0) target = $region9
  $region8: #{vae_forward.1} parent=0 // pred_region
    _
  $region9: #{vae_forward.1} parent=0 // pred_fallthru
    _
  // Predicated region
  $region10: #{vae_forward.1} parent=0 // pred_check
    _
  $region11: #{vae_forward.1} parent=0 // pred_check_branch
    %17 = sbr.rel (0) target = $region13
  $region12: #{vae_forward.1} parent=0 // pred_region
    _
  $region13: #{vae_forward.1} parent=0 // pred_fallthru
    _
  // Predicated region
  $region14: #{vae_forward.1} parent=0 // pred_check
    _
  $region15: #{vae_forward.1} parent=0 // pred_check_branch
    %19 = sbr.rel (0) target = $region17
  $region16: #{vae_forward.1} parent=0 // pred_region
    _
  $region17: #{vae_forward.1} parent=0 // pred_fallthru
    _
  // Predicated region
  $region18: #{vae_forward.1} parent=0 // pred_check
    _
  $region19: #{vae_forward.1} parent=0 // pred_check_branch
    %21 = sbr.rel (0) target = $region21
  $region20: #{vae_forward.1} parent=0 // pred_region
    _
  $region21: #{vae_forward.1} parent=0 // pred_fallthru
    _
  %v23 = vld [vmem:[%s3] sm:$0xff]
  %v24 = vld [vmem:[%s3 + $0x8] sm:$0xff]
  %v25 = vld [vmem:[%s3 + $0x10] sm:$0xff]
  %v26 = vld [vmem:[%s3 + $0x18] sm:$0xff]
  %v27 = vld [vmem:[%s3 + $0x20] sm:$0xff]
  %v28 = vld [vmem:[%s3 + $0x28] sm:$0xff]
  %v29 = vld [vmem:[%s3 + $0x30] sm:$0xff]
  %v30 = vld [vmem:[%s3 + $0x38] sm:$0xff]
  %v31 = vld [vmem:[%s3 + $0x40] sm:$0xff]
  %v32 = vld [vmem:[%s3 + $0x50] sm:$0xff]
  %v33 = vld [vmem:[%s3 + $0x60] sm:$0xff]
  %v34 = vld [vmem:[%s3 + $0x70] sm:$0xff]
  %v35 = vld [vmem:[%s3 + $0x80] sm:$0xff]
  %v36 = vld [vmem:[%s3 + $0x90] sm:$0xff]
  %v37 = vld [vmem:[%s3 + $0xa0] sm:$0xff]
  %v38 = vld [vmem:[%s3 + $0xb0] sm:$0xff]
  %v39 = vld [vmem:[%s3 + $0xc0] sm:$0xff]
  %v40 = vld [vmem:[%s3 + $0xd0] sm:$0xff]
  %v41 = vld [vmem:[%s3 + $0xe0] sm:$0xff]
  %v42 = vld [vmem:[%s3 + $0xf0] sm:$0xff]
  %v43 = vld [vmem:[%s3 + $0x100] sm:$0xff]
  %v44 = vld [vmem:[%s3 + $0x110] sm:$0xff]
  %v45 = vld [vmem:[%s3 + $0x120] sm:$0xff]
  %v46 = vld [vmem:[%s3 + $0x130] sm:$0xff]
  %v47 = vld [vmem:[%s3 + $0x140] sm:$0xff]
  %v48 = vld [vmem:[%s3 + $0x150] sm:$0xff]
  %v49 = vld [vmem:[%s3 + $0x160] sm:$0xff]
  %v50 = vld [vmem:[%s3 + $0x170] sm:$0xff]
  %v51 = vld [vmem:[%s3 + $0x180] sm:$0xff]
  %v52 = vld [vmem:[%s3 + $0x190] sm:$0xff]
  %v53 = vld [vmem:[%s3 + $0x1a0] sm:$0xff]
  %v54 = vld [vmem:[%s3 + $0x1b0] sm:$0xff]
  %v55 = vld [vmem:[%s3 + $0x1c0] sm:$0xff]
  %v56 = vld [vmem:[%s3 + $0x1c8] sm:$0xff]
  %v57 = vld [vmem:[%s0] sm:$0xff]
  %v58 = vld [vmem:[%s0 + $0x8] sm:$0xff]
  %v59 = vld [vmem:[%s0 + $0x10] sm:$0xff]
  %v60 = vld [vmem:[%s0 + $0x18] sm:$0xff]
  %v61 = vld [vmem:[%s0 + $0x20] sm:$0xff]
  %v62 = vld [vmem:[%s0 + $0x28] sm:$0xff]
  %v63 = vld [vmem:[%s0 + $0x30] sm:$0xff]
  %v64 = vld [vmem:[%s0 + $0x38] sm:$0xff]
  %v65 = vld [vmem:[%s0 + $0x40] sm:$0xff]
  %v66 = vpack.c.bf16 %v57, %v57
  %v67 = vpack.c.bf16 %v58, %v58
  %v68 = vpack.c.bf16 %v59, %v59
  %v69 = vpack.c.bf16 %v60, %v60
  %v70 = vpack.c.bf16 %v61, %v61
  %v71 = vpack.c.bf16 %v62, %v62
  %v72 = vpack.c.bf16 %v63, %v63
  %v73 = vpack.c.bf16 %v64, %v64
  %v74 = vld [vmem:[%s1] sm:$0xf]
  %v75 = vld [vmem:[%s1 + $0x4] sm:$0xf]
  %v76 = vld [vmem:[%s1 + $0x8] sm:$0xf]
  %v77 = vld [vmem:[%s1 + $0xc] sm:$0xf]
  %v78 = vld [vmem:[%s1 + $0x10] sm:$0xf]
  %v79 = vld [vmem:[%s1 + $0x14] sm:$0xf]
  %v80 = vld [vmem:[%s1 + $0x18] sm:$0xf]
  %v81 = vld [vmem:[%s1 + $0x1c] sm:$0xf]
  %v82 = vld [vmem:[%s1 + $0x20] sm:$0xf]
  %v83 = vld [vmem:[%s1 + $0x24] sm:$0xf]
  %v84 = vld [vmem:[%s1 + $0x28] sm:$0xf]
  %v85 = vld [vmem:[%s1 + $0x2c] sm:$0xf]
  %v86 = vld [vmem:[%s1 + $0x30] sm:$0xf]
  %v87 = vld [vmem:[%s1 + $0x34] sm:$0xf]
  %v88 = vld [vmem:[%s1 + $0x38] sm:$0xf]
  %v89 = vld [vmem:[%s1 + $0x3c] sm:$0xf]
  %v90 = vld [vmem:[%s1 + $0x40] sm:$0xf]
  %v91 = vld [vmem:[%s1 + $0x44] sm:$0xf]
  %v92 = vld [vmem:[%s1 + $0x48] sm:$0xf]
  %v93 = vld [vmem:[%s1 + $0x4c] sm:$0xf]
  %v94 = vld [vmem:[%s1 + $0x50] sm:$0xf]
  %v95 = vld [vmem:[%s1 + $0x54] sm:$0xf]
  %v96 = vld [vmem:[%s1 + $0x58] sm:$0xf]
  %v97 = vld [vmem:[%s1 + $0x5c] sm:$0xf]
  %v98 = vld [vmem:[%s1 + $0x60] sm:$0xf]
  %v99 = vld [vmem:[%s1 + $0x64] sm:$0xf]
  %v100 = vld [vmem:[%s1 + $0x68] sm:$0xf]
  %v101 = vld [vmem:[%s1 + $0x6c] sm:$0xf]
  %v102 = vld [vmem:[%s1 + $0x70] sm:$0xf]
  %v103 = vld [vmem:[%s1 + $0x74] sm:$0xf]
  %v104 = vld [vmem:[%s1 + $0x78] sm:$0xf]
  %v105 = vld [vmem:[%s1 + $0x7c] sm:$0xf]
  %v106 = vld [vmem:[%s1 + $0x80] sm:$0xf]
  %v107 = vld [vmem:[%s1 + $0x84] sm:$0xf]
  %v108 = vld [vmem:[%s1 + $0x88] sm:$0xf]
  %v109 = vld [vmem:[%s1 + $0x8c] sm:$0xf]
  %v110 = vld [vmem:[%s1 + $0x90] sm:$0xf]
  %v111 = vld [vmem:[%s1 + $0x94] sm:$0xf]
  %v112 = vld [vmem:[%s1 + $0x98] sm:$0xf]
  %v113 = vld [vmem:[%s1 + $0x9c] sm:$0xf]
  %v114 = vld [vmem:[%s1 + $0xa0] sm:$0xf]
  %v115 = vld [vmem:[%s1 + $0xa4] sm:$0xf]
  %v116 = vld [vmem:[%s1 + $0xa8] sm:$0xf]
  %v117 = vld [vmem:[%s1 + $0xac] sm:$0xf]
  %v118 = vld [vmem:[%s1 + $0xb0] sm:$0xf]
  %v119 = vld [vmem:[%s1 + $0xb4] sm:$0xf]
  %v120 = vld [vmem:[%s1 + $0xb8] sm:$0xf]
  %v121 = vld [vmem:[%s1 + $0xbc] sm:$0xf]
  %v122 = vld [vmem:[%s1 + $0xc0] sm:$0xf]
  %v123 = vld [vmem:[%s1 + $0xc4] sm:$0xf]
  %v124 = vld [vmem:[%s1 + $0xc8] sm:$0xf]
  %v125 = vld [vmem:[%s1 + $0xcc] sm:$0xf]
  %v126 = vld [vmem:[%s1 + $0xd0] sm:$0xf]
  %v127 = vld [vmem:[%s1 + $0xd4] sm:$0xf]
  %v128 = vld [vmem:[%s1 + $0xd8] sm:$0xf]
  %v129 = vld [vmem:[%s1 + $0xdc] sm:$0xf]
  %v130 = vld [vmem:[%s1 + $0xe0] sm:$0xf]
  %v131 = vld [vmem:[%s1 + $0xe4] sm:$0xf]
  %v132 = vld [vmem:[%s1 + $0xe8] sm:$0xf]
  %v133 = vld [vmem:[%s1 + $0xec] sm:$0xf]
  %v134 = vld [vmem:[%s1 + $0xf0] sm:$0xf]
  %v135 = vld [vmem:[%s1 + $0xf4] sm:$0xf]
  %v136 = vld [vmem:[%s1 + $0xf8] sm:$0xf]
  %v137 = vld [vmem:[%s1 + $0xfc] sm:$0xf]
  %v138 = vld [vmem:[%s1 + $0x100] sm:$0xf]
  %v139 = vld [vmem:[%s1 + $0x104] sm:$0xf]
  %v140 = vld [vmem:[%s1 + $0x108] sm:$0xf]
  %v141 = vld [vmem:[%s1 + $0x10c] sm:$0xf]
  %v142 = vld [vmem:[%s1 + $0x110] sm:$0xf]
  %v143 = vld [vmem:[%s1 + $0x114] sm:$0xf]
  %v144 = vld [vmem:[%s1 + $0x118] sm:$0xf]
  %v145 = vld [vmem:[%s1 + $0x11c] sm:$0xf]
  %v146 = vld [vmem:[%s1 + $0x120] sm:$0xf]
  %v147 = vld [vmem:[%s1 + $0x124] sm:$0xf]
  %v148 = vld [vmem:[%s1 + $0x128] sm:$0xf]
  %v149 = vld [vmem:[%s1 + $0x12c] sm:$0xf]
  %v150 = vld [vmem:[%s1 + $0x130] sm:$0xf]
  %v151 = vld [vmem:[%s1 + $0x134] sm:$0xf]
  %v152 = vld [vmem:[%s1 + $0x138] sm:$0xf]
  %v153 = vld [vmem:[%s1 + $0x13c] sm:$0xf]
  %v154 = vld [vmem:[%s1 + $0x140] sm:$0xf]
  %v155 = vld [vmem:[%s1 + $0x144] sm:$0xf]
  %v156 = vld [vmem:[%s1 + $0x148] sm:$0xf]
  %v157 = vld [vmem:[%s1 + $0x14c] sm:$0xf]
  %v158 = vld [vmem:[%s1 + $0x150] sm:$0xf]
  %v159 = vld [vmem:[%s1 + $0x154] sm:$0xf]
  %v160 = vld [vmem:[%s1 + $0x158] sm:$0xf]
  %v161 = vld [vmem:[%s1 + $0x15c] sm:$0xf]
  %v162 = vld [vmem:[%s1 + $0x160] sm:$0xf]
  %v163 = vld [vmem:[%s1 + $0x164] sm:$0xf]
  %v164 = vld [vmem:[%s1 + $0x168] sm:$0xf]
  %v165 = vld [vmem:[%s1 + $0x16c] sm:$0xf]
  %v166 = vld [vmem:[%s1 + $0x170] sm:$0xf]
  %v167 = vld [vmem:[%s1 + $0x174] sm:$0xf]
  %v168 = vld [vmem:[%s1 + $0x178] sm:$0xf]
  %v169 = vld [vmem:[%s1 + $0x17c] sm:$0xf]
  %v170 = vld [vmem:[%s1 + $0x180] sm:$0xf]
  %v171 = vld [vmem:[%s1 + $0x184] sm:$0xf]
  %v172 = vld [vmem:[%s1 + $0x188] sm:$0xf]
  %v173 = vld [vmem:[%s1 + $0x18c] sm:$0xf]
  %v174 = vld [vmem:[%s1 + $0x190] sm:$0xf]
  %v175 = vld [vmem:[%s1 + $0x194] sm:$0xf]
  %v176 = vld [vmem:[%s1 + $0x198] sm:$0xf]
  %v177 = vld [vmem:[%s1 + $0x19c] sm:$0xf]
  %v178 = vld [vmem:[%s1 + $0x1a0] sm:$0xf]
  %v179 = vld [vmem:[%s1 + $0x1a4] sm:$0xf]
  %v180 = vld [vmem:[%s1 + $0x1a8] sm:$0xf]
  %v181 = vld [vmem:[%s1 + $0x1ac] sm:$0xf]
  %v182 = vld [vmem:[%s1 + $0x1b0] sm:$0xf]
  %v183 = vld [vmem:[%s1 + $0x1b4] sm:$0xf]
  %v184 = vld [vmem:[%s1 + $0x1b8] sm:$0xf]
  %v185 = vld [vmem:[%s1 + $0x1bc] sm:$0xf]
  %v186 = vld [vmem:[%s1 + $0x1c0] sm:$0xf]
  %v187 = vld [vmem:[%s1 + $0x1c4] sm:$0xf]
  %v188 = vld [vmem:[%s1 + $0x1c8] sm:$0xf]
  %v189 = vld [vmem:[%s1 + $0x1cc] sm:$0xf]
  %v190 = vld [vmem:[%s1 + $0x1d0] sm:$0xf]
  %v191 = vld [vmem:[%s1 + $0x1d4] sm:$0xf]
  %v192 = vld [vmem:[%s1 + $0x1d8] sm:$0xf]
  %v193 = vld [vmem:[%s1 + $0x1dc] sm:$0xf]
  %v194 = vld [vmem:[%s1 + $0x1e0] sm:$0xf]
  %v195 = vld [vmem:[%s1 + $0x1e4] sm:$0xf]
  %v196 = vld [vmem:[%s1 + $0x1e8] sm:$0xf]
  %v197 = vld [vmem:[%s1 + $0x1ec] sm:$0xf]
  %v198 = vld [vmem:[%s1 + $0x1f0] sm:$0xf]
  %v199 = vld [vmem:[%s1 + $0x1f4] sm:$0xf]
  %v200 = vld [vmem:[%s1 + $0x1f8] sm:$0xf]
  %v201 = vld [vmem:[%s1 + $0x1fc] sm:$0xf]
  %v202 = vlaneseq
  %v203 = vshrl.u32 %v202, 7
  %v204 = vsub.s32 1, %v203
  %v205 = vrot.slane %v55, %v204
  %v334 = vunpack.c.l.b16 %v74
  %v335 = vunpack.c.l.b16 %v75
  %v336 = vunpack.c.l.b16 %v76
  %v337 = vunpack.c.l.b16 %v77
  %v338 = vunpack.c.l.b16 %v78
  %v339 = vunpack.c.l.b16 %v79
  %v340 = vunpack.c.l.b16 %v80
  %v341 = vunpack.c.l.b16 %v81
  %v342 = vunpack.c.l.b16 %v82
  %v343 = vunpack.c.l.b16 %v83
  %v344 = vunpack.c.l.b16 %v84
  %v345 = vunpack.c.l.b16 %v85
  %v346 = vunpack.c.l.b16 %v86
  %v347 = vunpack.c.l.b16 %v87
  %v348 = vunpack.c.l.b16 %v88
  %v349 = vunpack.c.l.b16 %v89
  %v350 = vunpack.c.l.b16 %v90
  %v351 = vunpack.c.l.b16 %v91
  %v352 = vunpack.c.l.b16 %v92
  %v353 = vunpack.c.l.b16 %v93
  %v354 = vunpack.c.l.b16 %v94
  %v355 = vunpack.c.l.b16 %v95
  %v356 = vunpack.c.l.b16 %v96
  %v357 = vunpack.c.l.b16 %v97
  %v358 = vunpack.c.l.b16 %v98
  %v359 = vunpack.c.l.b16 %v99
  %v360 = vunpack.c.l.b16 %v100
  %v361 = vunpack.c.l.b16 %v101
  %v362 = vunpack.c.l.b16 %v102
  %v363 = vunpack.c.l.b16 %v103
  %v364 = vunpack.c.l.b16 %v104
  %v365 = vunpack.c.l.b16 %v105
  %v366 = vunpack.c.l.b16 %v106
  %v367 = vunpack.c.l.b16 %v107
  %v368 = vunpack.c.l.b16 %v108
  %v369 = vunpack.c.l.b16 %v109
  %v370 = vunpack.c.l.b16 %v110
  %v371 = vunpack.c.l.b16 %v111
  %v372 = vunpack.c.l.b16 %v112
  %v373 = vunpack.c.l.b16 %v113
  %v374 = vunpack.c.l.b16 %v114
  %v375 = vunpack.c.l.b16 %v115
  %v376 = vunpack.c.l.b16 %v116
  %v377 = vunpack.c.l.b16 %v117
  %v378 = vunpack.c.l.b16 %v118
  %v379 = vunpack.c.l.b16 %v119
  %v380 = vunpack.c.l.b16 %v120
  %v381 = vunpack.c.l.b16 %v121
  %v382 = vunpack.c.l.b16 %v122
  %v383 = vunpack.c.l.b16 %v123
  %v384 = vunpack.c.l.b16 %v124
  %v385 = vunpack.c.l.b16 %v125
  %v386 = vunpack.c.l.b16 %v126
  %v387 = vunpack.c.l.b16 %v127
  %v388 = vunpack.c.l.b16 %v128
  %v389 = vunpack.c.l.b16 %v129
  %v390 = vunpack.c.l.b16 %v130
  %v391 = vunpack.c.l.b16 %v131
  %v392 = vunpack.c.l.b16 %v132
  %v393 = vunpack.c.l.b16 %v133
  %v394 = vunpack.c.l.b16 %v134
  %v395 = vunpack.c.l.b16 %v135
  %v396 = vunpack.c.l.b16 %v136
  %v397 = vunpack.c.l.b16 %v137
  %v398 = vunpack.c.l.b16 %v138
  %v399 = vunpack.c.l.b16 %v139
  %v400 = vunpack.c.l.b16 %v140
  %v401 = vunpack.c.l.b16 %v141
  %v402 = vunpack.c.l.b16 %v142
  %v403 = vunpack.c.l.b16 %v143
  %v404 = vunpack.c.l.b16 %v144
  %v405 = vunpack.c.l.b16 %v145
  %v406 = vunpack.c.l.b16 %v146
  %v407 = vunpack.c.l.b16 %v147
  %v408 = vunpack.c.l.b16 %v148
  %v409 = vunpack.c.l.b16 %v149
  %v410 = vunpack.c.l.b16 %v150
  %v411 = vunpack.c.l.b16 %v151
  %v412 = vunpack.c.l.b16 %v152
  %v413 = vunpack.c.l.b16 %v153
  %v414 = vunpack.c.l.b16 %v154
  %v415 = vunpack.c.l.b16 %v155
  %v416 = vunpack.c.l.b16 %v156
  %v417 = vunpack.c.l.b16 %v157
  %v418 = vunpack.c.l.b16 %v158
  %v419 = vunpack.c.l.b16 %v159
  %v420 = vunpack.c.l.b16 %v160
  %v421 = vunpack.c.l.b16 %v161
  %v422 = vunpack.c.l.b16 %v162
  %v423 = vunpack.c.l.b16 %v163
  %v424 = vunpack.c.l.b16 %v164
  %v425 = vunpack.c.l.b16 %v165
  %v426 = vunpack.c.l.b16 %v166
  %v427 = vunpack.c.l.b16 %v167
  %v428 = vunpack.c.l.b16 %v168
  %v429 = vunpack.c.l.b16 %v169
  %v430 = vunpack.c.l.b16 %v170
  %v431 = vunpack.c.l.b16 %v171
  %v432 = vunpack.c.l.b16 %v172
  %v433 = vunpack.c.l.b16 %v173
  %v434 = vunpack.c.l.b16 %v174
  %v435 = vunpack.c.l.b16 %v175
  %v436 = vunpack.c.l.b16 %v176
  %v437 = vunpack.c.l.b16 %v177
  %v438 = vunpack.c.l.b16 %v178
  %v439 = vunpack.c.l.b16 %v179
  %v440 = vunpack.c.l.b16 %v180
  %v441 = vunpack.c.l.b16 %v181
  %v442 = vunpack.c.l.b16 %v182
  %v443 = vunpack.c.l.b16 %v183
  %v444 = vunpack.c.l.b16 %v184
  %v445 = vunpack.c.l.b16 %v185
  %v446 = vunpack.c.l.b16 %v186
  %v447 = vunpack.c.l.b16 %v187
  %v448 = vunpack.c.l.b16 %v188
  %v449 = vunpack.c.l.b16 %v189
  %v450 = vunpack.c.l.b16 %v190
  %v451 = vunpack.c.l.b16 %v191
  %v452 = vunpack.c.l.b16 %v192
  %v453 = vunpack.c.l.b16 %v193
  %v454 = vunpack.c.l.b16 %v194
  %v455 = vunpack.c.l.b16 %v195
  %v456 = vunpack.c.l.b16 %v196
  %v457 = vunpack.c.l.b16 %v197
  %v458 = vunpack.c.l.b16 %v198
  %v459 = vunpack.c.l.b16 %v199
  %v460 = vunpack.c.l.b16 %v200
  %v461 = vunpack.c.l.b16 %v201
  %v462 = vpack.c.b16 %v335, %v334
  %v463 = vpack.c.b16 %v337, %v336
  %v464 = vpack.c.b16 %v339, %v338
  %v465 = vpack.c.b16 %v341, %v340
  %v466 = vpack.c.b16 %v343, %v342
  %v467 = vpack.c.b16 %v345, %v344
  %v468 = vpack.c.b16 %v347, %v346
  %v469 = vpack.c.b16 %v349, %v348
  %v470 = vpack.c.b16 %v351, %v350
  %v471 = vpack.c.b16 %v353, %v352
  %v472 = vpack.c.b16 %v355, %v354
  %v473 = vpack.c.b16 %v357, %v356
  %v474 = vpack.c.b16 %v359, %v358
  %v475 = vpack.c.b16 %v361, %v360
  %v476 = vpack.c.b16 %v363, %v362
  %v477 = vpack.c.b16 %v365, %v364
  %v478 = vpack.c.b16 %v367, %v366
  %v479 = vpack.c.b16 %v369, %v368
  %v480 = vpack.c.b16 %v371, %v370
  %v481 = vpack.c.b16 %v373, %v372
  %v482 = vpack.c.b16 %v375, %v374
  %v483 = vpack.c.b16 %v377, %v376
  %v484 = vpack.c.b16 %v379, %v378
  %v485 = vpack.c.b16 %v381, %v380
  %v486 = vpack.c.b16 %v383, %v382
  %v487 = vpack.c.b16 %v385, %v384
  %v488 = vpack.c.b16 %v387, %v386
  %v489 = vpack.c.b16 %v389, %v388
  %v490 = vpack.c.b16 %v391, %v390
  %v491 = vpack.c.b16 %v393, %v392
  %v492 = vpack.c.b16 %v395, %v394
  %v493 = vpack.c.b16 %v397, %v396
  %v494 = vpack.c.b16 %v399, %v398
  %v495 = vpack.c.b16 %v401, %v400
  %v496 = vpack.c.b16 %v403, %v402
  %v497 = vpack.c.b16 %v405, %v404
  %v498 = vpack.c.b16 %v407, %v406
  %v499 = vpack.c.b16 %v409, %v408
  %v500 = vpack.c.b16 %v411, %v410
  %v501 = vpack.c.b16 %v413, %v412
  %v502 = vpack.c.b16 %v415, %v414
  %v503 = vpack.c.b16 %v417, %v416
  %v504 = vpack.c.b16 %v419, %v418
  %v505 = vpack.c.b16 %v421, %v420
  %v506 = vpack.c.b16 %v423, %v422
  %v507 = vpack.c.b16 %v425, %v424
  %v508 = vpack.c.b16 %v427, %v426
  %v509 = vpack.c.b16 %v429, %v428
  %v510 = vpack.c.b16 %v431, %v430
  %v511 = vpack.c.b16 %v433, %v432
  %v512 = vpack.c.b16 %v435, %v434
  %v513 = vpack.c.b16 %v437, %v436
  %v514 = vpack.c.b16 %v439, %v438
  %v515 = vpack.c.b16 %v441, %v440
  %v516 = vpack.c.b16 %v443, %v442
  %v517 = vpack.c.b16 %v445, %v444
  %v518 = vpack.c.b16 %v447, %v446
  %v519 = vpack.c.b16 %v449, %v448
  %v520 = vpack.c.b16 %v451, %v450
  %v521 = vpack.c.b16 %v453, %v452
  %v522 = vpack.c.b16 %v455, %v454
  %v523 = vpack.c.b16 %v457, %v456
  %v524 = vpack.c.b16 %v459, %v458
  %v525 = vpack.c.b16 %v461, %v460
  %590 = vmatprep.subr.bf16.mxu0 0
  %591 = vmatpush1.bf16.msra.mxu0 %v469
  %592 = vmatprep.subr.bf16.mxu0 0
  %593 = vmatpush1.bf16.msra.mxu0 %v468
  %594 = vmatprep.subr.bf16.mxu0 0
  %595 = vmatpush1.bf16.msra.mxu0 %v467
  %596 = vmatprep.subr.bf16.mxu0 0
  %597 = vmatpush1.bf16.msra.mxu0 %v466
  %598 = vmatprep.subr.bf16.mxu0 0
  %599 = vmatpush1.bf16.msra.mxu0 %v465
  %600 = vmatprep.subr.bf16.mxu0 0
  %601 = vmatpush1.bf16.msra.mxu0 %v464
  %602 = vmatprep.subr.bf16.mxu0 0
  %603 = vmatpush1.bf16.msra.mxu0 %v463
  %604 = vmatprep.subr.bf16.mxu0 0
  %605 = vmatpush1.bf16.msra.mxu0 %v462
  %606 = vmatprep.subr.bf16.mxu0 0
  %607 = vmatpush2.bf16.msra.mxu0 %v477
  %608 = vmatprep.subr.bf16.mxu0 0
  %609 = vmatpush2.bf16.msra.mxu0 %v476
  %610 = vmatprep.subr.bf16.mxu0 0
  %611 = vmatpush2.bf16.msra.mxu0 %v475
  %612 = vmatprep.subr.bf16.mxu0 0
  %613 = vmatpush2.bf16.msra.mxu0 %v474
  %614 = vmatprep.subr.bf16.mxu0 0
  %615 = vmatpush2.bf16.msra.mxu0 %v473
  %616 = vmatprep.subr.bf16.mxu0 0
  %617 = vmatpush2.bf16.msra.mxu0 %v472
  %618 = vmatprep.subr.bf16.mxu0 0
  %619 = vmatpush2.bf16.msra.mxu0 %v471
  %620 = vmatprep.subr.bf16.mxu0 0
  %621 = vmatpush2.bf16.msra.mxu0 %v470
  %622 = vmatprep.mubr.bf16.mxu0 %v67
  %623 = vmatmul.mubr.bf16.gmra.mxu0 %v66
  %v624 = vpop.f32.mrf.mxu0
  %v625 = vadd.f32 %v205, %v624
  %v626 = vpop.f32.mrf.mxu0
  %v627 = vpop.f32.mrf.mxu0
  %v628 = vpop.f32.mrf.mxu0
  %629 = vdwg.mxu0
  %630 = vmatprep.subr.bf16.mxu0 0
  %631 = vmatpush1.bf16.msra.mxu0 %v485
  %632 = vmatprep.subr.bf16.mxu0 0
  %633 = vmatpush1.bf16.msra.mxu0 %v484
  %634 = vmatprep.subr.bf16.mxu0 0
  %635 = vmatpush1.bf16.msra.mxu0 %v483
  %636 = vmatprep.subr.bf16.mxu0 0
  %637 = vmatpush1.bf16.msra.mxu0 %v482
  %638 = vmatprep.subr.bf16.mxu0 0
  %639 = vmatpush1.bf16.msra.mxu0 %v481
  %640 = vmatprep.subr.bf16.mxu0 0
  %641 = vmatpush1.bf16.msra.mxu0 %v480
  %642 = vmatprep.subr.bf16.mxu0 0
  %643 = vmatpush1.bf16.msra.mxu0 %v479
  %644 = vmatprep.subr.bf16.mxu0 0
  %645 = vmatpush1.bf16.msra.mxu0 %v478
  %646 = vmatprep.subr.bf16.mxu0 0
  %647 = vmatpush2.bf16.msra.mxu0 %v493
  %648 = vmatprep.subr.bf16.mxu0 0
  %649 = vmatpush2.bf16.msra.mxu0 %v492
  %650 = vmatprep.subr.bf16.mxu0 0
  %651 = vmatpush2.bf16.msra.mxu0 %v491
  %652 = vmatprep.subr.bf16.mxu0 0
  %653 = vmatpush2.bf16.msra.mxu0 %v490
  %654 = vmatprep.subr.bf16.mxu0 0
  %655 = vmatpush2.bf16.msra.mxu0 %v489
  %656 = vmatprep.subr.bf16.mxu0 0
  %657 = vmatpush2.bf16.msra.mxu0 %v488
  %658 = vmatprep.subr.bf16.mxu0 0
  %659 = vmatpush2.bf16.msra.mxu0 %v487
  %660 = vmatprep.subr.bf16.mxu0 0
  %661 = vmatpush2.bf16.msra.mxu0 %v486
  %662 = vmatprep.mubr.bf16.mxu0 %v69
  %663 = vmatmul.mubr.bf16.gmra.mxu0 %v68
  %v664 = vpop.f32.mrf.mxu0
  %v665 = vadd.f32 %v625, %v664
  %v666 = vpop.f32.mrf.mxu0
  %v667 = vpop.f32.mrf.mxu0
  %v668 = vpop.f32.mrf.mxu0
  %669 = vdwg.mxu0
  %670 = vmatprep.subr.bf16.mxu0 0
  %671 = vmatpush1.bf16.msra.mxu0 %v501
  %672 = vmatprep.subr.bf16.mxu0 0
  %673 = vmatpush1.bf16.msra.mxu0 %v500
  %674 = vmatprep.subr.bf16.mxu0 0
  %675 = vmatpush1.bf16.msra.mxu0 %v499
  %676 = vmatprep.subr.bf16.mxu0 0
  %677 = vmatpush1.bf16.msra.mxu0 %v498
  %678 = vmatprep.subr.bf16.mxu0 0
  %679 = vmatpush1.bf16.msra.mxu0 %v497
  %680 = vmatprep.subr.bf16.mxu0 0
  %681 = vmatpush1.bf16.msra.mxu0 %v496
  %682 = vmatprep.subr.bf16.mxu0 0
  %683 = vmatpush1.bf16.msra.mxu0 %v495
  %684 = vmatprep.subr.bf16.mxu0 0
  %685 = vmatpush1.bf16.msra.mxu0 %v494
  %686 = vmatprep.subr.bf16.mxu0 0
  %687 = vmatpush2.bf16.msra.mxu0 %v509
  %688 = vmatprep.subr.bf16.mxu0 0
  %689 = vmatpush2.bf16.msra.mxu0 %v508
  %690 = vmatprep.subr.bf16.mxu0 0
  %691 = vmatpush2.bf16.msra.mxu0 %v507
  %692 = vmatprep.subr.bf16.mxu0 0
  %693 = vmatpush2.bf16.msra.mxu0 %v506
  %694 = vmatprep.subr.bf16.mxu0 0
  %695 = vmatpush2.bf16.msra.mxu0 %v505
  %696 = vmatprep.subr.bf16.mxu0 0
  %697 = vmatpush2.bf16.msra.mxu0 %v504
  %698 = vmatprep.subr.bf16.mxu0 0
  %699 = vmatpush2.bf16.msra.mxu0 %v503
  %700 = vmatprep.subr.bf16.mxu0 0
  %701 = vmatpush2.bf16.msra.mxu0 %v502
  %702 = vmatprep.mubr.bf16.mxu0 %v71
  %703 = vmatmul.mubr.bf16.gmra.mxu0 %v70
  %v704 = vpop.f32.mrf.mxu0
  %v705 = vadd.f32 %v665, %v704
  %v706 = vpop.f32.mrf.mxu0
  %v707 = vpop.f32.mrf.mxu0
  %v708 = vpop.f32.mrf.mxu0
  %709 = vdwg.mxu0
  %710 = vmatprep.subr.bf16.mxu0 0
  %711 = vmatpush1.bf16.msra.mxu0 %v517
  %712 = vmatprep.subr.bf16.mxu0 0
  %713 = vmatpush1.bf16.msra.mxu0 %v516
  %714 = vmatprep.subr.bf16.mxu0 0
  %715 = vmatpush1.bf16.msra.mxu0 %v515
  %716 = vmatprep.subr.bf16.mxu0 0
  %717 = vmatpush1.bf16.msra.mxu0 %v514
  %718 = vmatprep.subr.bf16.mxu0 0
  %719 = vmatpush1.bf16.msra.mxu0 %v513
  %720 = vmatprep.subr.bf16.mxu0 0
  %721 = vmatpush1.bf16.msra.mxu0 %v512
  %722 = vmatprep.subr.bf16.mxu0 0
  %723 = vmatpush1.bf16.msra.mxu0 %v511
  %724 = vmatprep.subr.bf16.mxu0 0
  %725 = vmatpush1.bf16.msra.mxu0 %v510
  %726 = vmatprep.subr.bf16.mxu0 0
  %727 = vmatpush2.bf16.msra.mxu0 %v525
  %728 = vmatprep.subr.bf16.mxu0 0
  %729 = vmatpush2.bf16.msra.mxu0 %v524
  %730 = vmatprep.subr.bf16.mxu0 0
  %731 = vmatpush2.bf16.msra.mxu0 %v523
  %732 = vmatprep.subr.bf16.mxu0 0
  %733 = vmatpush2.bf16.msra.mxu0 %v522
  %734 = vmatprep.subr.bf16.mxu0 0
  %735 = vmatpush2.bf16.msra.mxu0 %v521
  %736 = vmatprep.subr.bf16.mxu0 0
  %737 = vmatpush2.bf16.msra.mxu0 %v520
  %738 = vmatprep.subr.bf16.mxu0 0
  %739 = vmatpush2.bf16.msra.mxu0 %v519
  %740 = vmatprep.subr.bf16.mxu0 0
  %741 = vmatpush2.bf16.msra.mxu0 %v518
  %742 = vmatprep.mubr.bf16.mxu0 %v73
  %743 = vmatmul.mubr.bf16.gmra.mxu0 %v72
  %v744 = vpop.f32.mrf.mxu0
  %v745 = vadd.f32 %v705, %v744
  %v746 = vpop.f32.mrf.mxu0
  %v747 = vpop.f32.mrf.mxu0
  %v748 = vpop.f32.mrf.mxu0
  %749 = vdwg.mxu0
  %v750 = vmax.f32 %v745, 0.0
  %v751 = vlaneseq
  %v752 = vshrl.u32 %v751, 7
  %v753 = vsub.s32 2, %v752
  %v754 = vrot.slane %v55, %v753
  %vm755 = vcmask 261120
  %v757 = vsel %vm755, %v750, 0
  %759 = vmatprep.subr.mxu0 0.0
  %760 = vmatpush1.msra.mxu0 0.0
  %761 = vmatprep.subr.mxu0 0.0
  %762 = vmatpush1.msra.mxu0 0.0
  %763 = vmatprep.subr.mxu0 0.0
  %764 = vmatpush1.msra.mxu0 0.0
  %765 = vmatprep.subr.mxu0 0.0
  %766 = vmatpush1.msra.mxu0 0.0
  %767 = vmatprep.subr.mxu0 0.0
  %768 = vmatpush1.msra.mxu0 0.0
  %769 = vmatprep.subr.mxu0 0.0
  %770 = vmatpush1.msra.mxu0 0.0
  %771 = vmatprep.subr.mxu0 0.0
  %772 = vmatpush1.msra.mxu0 0.0
  %773 = vmatprep.subr.mxu0 0.0
  %774 = vmatpush1.msra.mxu0 0.0
  %775 = vmatprep.subr.mxu0 0.0
  %776 = vmatpush1.msra.mxu0 0.0
  %777 = vmatprep.subr.mxu0 0.0
  %778 = vmatpush1.msra.mxu0 0.0
  %779 = vmatprep.subr.mxu0 0.0
  %780 = vmatpush1.msra.mxu0 0.0
  %781 = vmatprep.subr.mxu0 0.0
  %782 = vmatpush1.msra.mxu0 0.0
  %783 = vmatprep.subr.mxu0 0.0
  %784 = vmatpush1.msra.mxu0 %v34
  %785 = vmatprep.subr.mxu0 0.0
  %786 = vmatpush1.msra.mxu0 %v33
  %787 = vmatprep.subr.mxu0 0.0
  %788 = vmatpush1.msra.mxu0 %v32
  %789 = vmatprep.subr.mxu0 0.0
  %790 = vmatpush1.msra.mxu0 %v31
  %791 = vmatprep.subr.mxu0 0.0
  %792 = vmatpush2.msra.mxu0 0.0
  %793 = vmatprep.subr.mxu0 0.0
  %794 = vmatpush2.msra.mxu0 0.0
  %795 = vmatprep.subr.mxu0 0.0
  %796 = vmatpush2.msra.mxu0 0.0
  %797 = vmatprep.subr.mxu0 0.0
  %798 = vmatpush2.msra.mxu0 0.0
  %799 = vmatprep.subr.mxu0 0.0
  %800 = vmatpush2.msra.mxu0 0.0
  %801 = vmatprep.subr.mxu0 0.0
  %802 = vmatpush2.msra.mxu0 0.0
  %803 = vmatprep.subr.mxu0 0.0
  %804 = vmatpush2.msra.mxu0 0.0
  %805 = vmatprep.subr.mxu0 0.0
  %806 = vmatpush2.msra.mxu0 0.0
  %807 = vmatprep.subr.mxu0 0.0
  %808 = vmatpush2.msra.mxu0 0.0
  %809 = vmatprep.subr.mxu0 0.0
  %810 = vmatpush2.msra.mxu0 0.0
  %811 = vmatprep.subr.mxu0 0.0
  %812 = vmatpush2.msra.mxu0 0.0
  %813 = vmatprep.subr.mxu0 0.0
  %814 = vmatpush2.msra.mxu0 0.0
  %815 = vmatprep.subr.mxu0 0.0
  %816 = vmatpush2.msra.mxu0 0.0
  %817 = vmatprep.subr.mxu0 0.0
  %818 = vmatpush2.msra.mxu0 0.0
  %819 = vmatprep.subr.mxu0 0.0
  %820 = vmatpush2.msra.mxu0 0.0
  %821 = vmatprep.subr.mxu0 0.0
  %822 = vmatpush2.msra.mxu0 0.0
  %823 = vmatprep.mubr.f32.mxu0 0.0
  %824 = vmatmul.mubr.f32.gmra.mxu0 %v757
  %v825 = vpop.f32.mrf.mxu0
  %v826 = vadd.f32 %v754, %v825
  %v827 = vpop.f32.mrf.mxu0
  %828 = vdwg.mxu0
  %v829 = vmax.f32 %v826, 0.0
  %v830 = vlaneseq
  %v831 = vshrl.u32 %v830, 7
  %v832 = vsub.s32 0, %v831
  %v833 = vrot.slane %v55, %v832
  %v834 = vlaneseq
  %v835 = vshrl.u32 %v834, 7
  %v836 = vsub.s32 0, %v835
  %v837 = vrot.slane %v56, %v836
  %v839 = vsel %vm755, %v829, 0
  %841 = vmatprep.subr.mxu0 0.0
  %842 = vmatpush1.msra.mxu0 0.0
  %843 = vmatprep.subr.mxu0 0.0
  %844 = vmatpush1.msra.mxu0 0.0
  %845 = vmatprep.subr.mxu0 0.0
  %846 = vmatpush1.msra.mxu0 0.0
  %847 = vmatprep.subr.mxu0 0.0
  %848 = vmatpush1.msra.mxu0 0.0
  %849 = vmatprep.subr.mxu0 0.0
  %850 = vmatpush1.msra.mxu0 0.0
  %851 = vmatprep.subr.mxu0 0.0
  %852 = vmatpush1.msra.mxu0 0.0
  %853 = vmatprep.subr.mxu0 0.0
  %854 = vmatpush1.msra.mxu0 0.0
  %855 = vmatprep.subr.mxu0 0.0
  %856 = vmatpush1.msra.mxu0 0.0
  %857 = vmatprep.subr.mxu0 0.0
  %858 = vmatpush1.msra.mxu0 0.0
  %859 = vmatprep.subr.mxu0 0.0
  %860 = vmatpush1.msra.mxu0 0.0
  %861 = vmatprep.subr.mxu0 0.0
  %862 = vmatpush1.msra.mxu0 0.0
  %863 = vmatprep.subr.mxu0 0.0
  %864 = vmatpush1.msra.mxu0 0.0
  %865 = vmatprep.subr.mxu0 %v30
  %866 = vmatpush1.msra.mxu0 %v29
  %867 = vmatprep.subr.mxu0 %v28
  %868 = vmatpush1.msra.mxu0 %v27
  %869 = vmatprep.subr.mxu0 %v26
  %870 = vmatpush1.msra.mxu0 %v25
  %871 = vmatprep.subr.mxu0 %v24
  %872 = vmatpush1.msra.mxu0 %v23
  %873 = vmatprep.subr.mxu0 0.0
  %874 = vmatpush2.msra.mxu0 0.0
  %875 = vmatprep.subr.mxu0 0.0
  %876 = vmatpush2.msra.mxu0 0.0
  %877 = vmatprep.subr.mxu0 0.0
  %878 = vmatpush2.msra.mxu0 0.0
  %879 = vmatprep.subr.mxu0 0.0
  %880 = vmatpush2.msra.mxu0 0.0
  %881 = vmatprep.subr.mxu0 0.0
  %882 = vmatpush2.msra.mxu0 0.0
  %883 = vmatprep.subr.mxu0 0.0
  %884 = vmatpush2.msra.mxu0 0.0
  %885 = vmatprep.subr.mxu0 0.0
  %886 = vmatpush2.msra.mxu0 0.0
  %887 = vmatprep.subr.mxu0 0.0
  %888 = vmatpush2.msra.mxu0 0.0
  %889 = vmatprep.subr.mxu0 0.0
  %890 = vmatpush2.msra.mxu0 0.0
  %891 = vmatprep.subr.mxu0 0.0
  %892 = vmatpush2.msra.mxu0 0.0
  %893 = vmatprep.subr.mxu0 0.0
  %894 = vmatpush2.msra.mxu0 0.0
  %895 = vmatprep.subr.mxu0 0.0
  %896 = vmatpush2.msra.mxu0 0.0
  %897 = vmatprep.subr.mxu0 0.0
  %898 = vmatpush2.msra.mxu0 0.0
  %899 = vmatprep.subr.mxu0 0.0
  %900 = vmatpush2.msra.mxu0 0.0
  %901 = vmatprep.subr.mxu0 0.0
  %902 = vmatpush2.msra.mxu0 0.0
  %903 = vmatprep.subr.mxu0 0.0
  %904 = vmatpush2.msra.mxu0 0.0
  %905 = vmatprep.mubr.f32.mxu0 0.0
  %906 = vmatmul.mubr.f32.gmra.mxu0 %v839
  %v907 = vpop.f32.mrf.mxu0
  %v908 = vadd.f32 %v833, %v907
  %v909 = vpop.f32.mrf.mxu0
  %v910 = vadd.f32 %v837, %v909
  %911 = vdwg.mxu0
  %v912 = vlaneseq
  %v913 = vand.u32 %v912, 127
  %vm914 = vcmp.ge.s32.totalorder %v913, 16
  %vm915 = vcmp.lt.s32.totalorder %v913, 20
  %vm916 = vmand %vm914, %vm915
  %v917 = vsel %vm916, %v908, -1e+30
  %918 = vmax.xlane.f32.xlu0 %v917
  %v919 = vpop.xlane.xlu0 %918
  %v920 = vsub.f32 %v908, %v919
  %v921 = vmul.f32 %v920, 1.442695
  %v922 = vpow.pop %v921
  %v923 = vsel %vm916, %v922, 0.0
  %924 = vadd.xlane.f32.xlu0 %v923
  %v925 = vpop.xlane.xlu0 %924
  %v926 = vrcp.pop %v925
  %v927 = vmul.f32 %v923, %v926
  %v928 = vadd.f32 %v927, 0.0
  %vm929 = vcmp.ge.s32.totalorder %v913, 20
  %vm930 = vcmp.lt.s32.totalorder %v913, 23
  %vm931 = vmand %vm929, %vm930
  %v932 = vsel %vm931, %v908, -1e+30
  %933 = vmax.xlane.f32.xlu0 %v932
  %v934 = vpop.xlane.xlu0 %933
  %v935 = vsub.f32 %v908, %v934
  %v936 = vmul.f32 %v935, 1.442695
  %v937 = vpow.pop %v936
  %v938 = vsel %vm931, %v937, 0.0
  %939 = vadd.xlane.f32.xlu0 %v938
  %v940 = vpop.xlane.xlu0 %939
  %v941 = vrcp.pop %v940
  %v942 = vmul.f32 %v938, %v941
  %v943 = vadd.f32 %v928, %v942
  %vm944 = vcmp.lt.s32.totalorder %v913, 16
  %v945 = vsel %vm944, %v908, %v943
  %946 = vst [vmem:[%s6] sm:$0xff] %v945
  %v947 = vmul.f32 %v910, 0.5
  %v948 = vmul.f32 %v947, 1.442695
  %v949 = vpow.pop %v948
  %v950 = vmul.f32 %v949, %v65
  %v951 = vadd.f32 %v908, %v950
  %v952 = vmax.f32 %v65, 1e-12
  %v953 = vmin.f32 %v952, 0.9999999
  %v954 = vadd.f32 %v953, 1e-12
  %v955 = vlog2.pop %v954
  %v956 = vmul.f32 %v955, 0.6931472
  %v957 = vsub.f32 0.0, %v956
  %v958 = vadd.f32 %v957, 1e-12
  %v959 = vlog2.pop %v958
  %v960 = vmul.f32 %v959, 0.6931472
  %v961 = vsub.f32 0.0, %v960
  %v962 = vadd.f32 %v910, %v961
  %v963 = vrcp.pop 0.67
  %v964 = vmul.f32 %v962, %v963
  %vm965 = vcmp.ge.s32.totalorder %v913, 8
  %vm966 = vcmp.lt.s32.totalorder %v913, 12
  %vm967 = vmand %vm965, %vm966
  %v968 = vsel %vm967, %v964, -1e+30
  %969 = vmax.xlane.f32.xlu0 %v968
  %v970 = vpop.xlane.xlu0 %969
  %v971 = vsub.f32 %v964, %v970
  %v972 = vmul.f32 %v971, 1.442695
  %v973 = vpow.pop %v972
  %v974 = vsel %vm967, %v973, 0.0
  %975 = vadd.xlane.f32.xlu0 %v974
  %v976 = vpop.xlane.xlu0 %975
  %v977 = vrcp.pop %v976
  %v978 = vmul.f32 %v974, %v977
  %v979 = vadd.f32 %v978, 0.0
  %vm980 = vcmp.ge.s32.totalorder %v913, 12
  %vm981 = vcmp.lt.s32.totalorder %v913, 15
  %vm982 = vmand %vm980, %vm981
  %v983 = vsel %vm982, %v964, -1e+30
  %984 = vmax.xlane.f32.xlu0 %v983
  %v985 = vpop.xlane.xlu0 %984
  %v986 = vsub.f32 %v964, %v985
  %v987 = vmul.f32 %v986, 1.442695
  %v988 = vpow.pop %v987
  %v989 = vsel %vm982, %v988, 0.0
  %990 = vadd.xlane.f32.xlu0 %v989
  %v991 = vpop.xlane.xlu0 %990
  %v992 = vrcp.pop %v991
  %v993 = vmul.f32 %v989, %v992
  %v994 = vadd.f32 %v979, %v993
  %vm995 = vcmp.lt.s32.totalorder %v913, 8
  %v996 = vsel %vm995, %v951, %v994
  %997 = vst [vmem:[%s6 + $0x8] sm:$0xff] %v996
  %v998 = vlaneseq
  %v999 = vshrl.u32 %v998, 7
  %v1000 = vsub.s32 3, %v999
  %v1001 = vrot.slane %v55, %v1000
  %1002 = vmatprep.subr.mxu0 0.0
  %1003 = vmatpush1.msra.mxu0 %v54
  %1004 = vmatprep.subr.mxu0 0.0
  %1005 = vmatpush1.msra.mxu0 %v53
  %1006 = vmatprep.subr.mxu0 0.0
  %1007 = vmatpush1.msra.mxu0 %v52
  %1008 = vmatprep.subr.mxu0 0.0
  %1009 = vmatpush1.msra.mxu0 %v51
  %1010 = vmatprep.subr.mxu0 0.0
  %1011 = vmatpush1.msra.mxu0 %v50
  %1012 = vmatprep.subr.mxu0 0.0
  %1013 = vmatpush1.msra.mxu0 %v49
  %1014 = vmatprep.subr.mxu0 0.0
  %1015 = vmatpush1.msra.mxu0 %v48
  %1016 = vmatprep.subr.mxu0 0.0
  %1017 = vmatpush1.msra.mxu0 %v47
  %1018 = vmatprep.subr.mxu0 0.0
  %1019 = vmatpush1.msra.mxu0 %v46
  %1020 = vmatprep.subr.mxu0 0.0
  %1021 = vmatpush1.msra.mxu0 %v45
  %1022 = vmatprep.subr.mxu0 0.0
  %1023 = vmatpush1.msra.mxu0 %v44
  %1024 = vmatprep.subr.mxu0 0.0
  %1025 = vmatpush1.msra.mxu0 %v43
  %1026 = vmatprep.subr.mxu0 0.0
  %1027 = vmatpush1.msra.mxu0 %v42
  %1028 = vmatprep.subr.mxu0 0.0
  %1029 = vmatpush1.msra.mxu0 %v41
  %1030 = vmatprep.subr.mxu0 0.0
  %1031 = vmatpush1.msra.mxu0 %v40
  %1032 = vmatprep.subr.mxu0 0.0
  %1033 = vmatpush1.msra.mxu0 %v39
  %1034 = vmatprep.subr.mxu0 0.0
  %1035 = vmatpush2.msra.mxu0 0.0
  %1036 = vmatprep.subr.mxu0 0.0
  %1037 = vmatpush2.msra.mxu0 0.0
  %1038 = vmatprep.subr.mxu0 0.0
  %1039 = vmatpush2.msra.mxu0 0.0
  %1040 = vmatprep.subr.mxu0 0.0
  %1041 = vmatpush2.msra.mxu0 0.0
  %1042 = vmatprep.subr.mxu0 0.0
  %1043 = vmatpush2.msra.mxu0 0.0
  %1044 = vmatprep.subr.mxu0 0.0
  %1045 = vmatpush2.msra.mxu0 0.0
  %1046 = vmatprep.subr.mxu0 0.0
  %1047 = vmatpush2.msra.mxu0 0.0
  %1048 = vmatprep.subr.mxu0 0.0
  %1049 = vmatpush2.msra.mxu0 0.0
  %1050 = vmatprep.subr.mxu0 0.0
  %1051 = vmatpush2.msra.mxu0 0.0
  %1052 = vmatprep.subr.mxu0 0.0
  %1053 = vmatpush2.msra.mxu0 0.0
  %1054 = vmatprep.subr.mxu0 0.0
  %1055 = vmatpush2.msra.mxu0 0.0
  %1056 = vmatprep.subr.mxu0 0.0
  %1057 = vmatpush2.msra.mxu0 0.0
  %1058 = vmatprep.subr.mxu0 0.0
  %1059 = vmatpush2.msra.mxu0 0.0
  %1060 = vmatprep.subr.mxu0 0.0
  %1061 = vmatpush2.msra.mxu0 0.0
  %1062 = vmatprep.subr.mxu0 0.0
  %1063 = vmatpush2.msra.mxu0 0.0
  %1064 = vmatprep.subr.mxu0 0.0
  %1065 = vmatpush2.msra.mxu0 0.0
  %1066 = vmatprep.mubr.f32.mxu0 0.0
  %1067 = vmatmul.mubr.f32.gmra.mxu0 %v996
  %v1068 = vpop.f32.mrf.mxu0
  %v1069 = vadd.f32 %v1001, %v1068
  %v1070 = vpop.f32.mrf.mxu0
  %1071 = vdwg.mxu0
  %v1072 = vmax.f32 %v1069, 0.0
  %v1073 = vlaneseq
  %v1074 = vshrl.u32 %v1073, 7
  %v1075 = vsub.s32 4, %v1074
  %v1076 = vrot.slane %v55, %v1075
  %v1078 = vsel %vm755, %v1072, 0
  %1080 = vmatprep.subr.mxu0 0.0
  %1081 = vmatpush1.msra.mxu0 0.0
  %1082 = vmatprep.subr.mxu0 0.0
  %1083 = vmatpush1.msra.mxu0 0.0
  %1084 = vmatprep.subr.mxu0 0.0
  %1085 = vmatpush1.msra.mxu0 0.0
  %1086 = vmatprep.subr.mxu0 0.0
  %1087 = vmatpush1.msra.mxu0 0.0
  %1088 = vmatprep.subr.mxu0 0.0
  %1089 = vmatpush1.msra.mxu0 0.0
  %1090 = vmatprep.subr.mxu0 0.0
  %1091 = vmatpush1.msra.mxu0 0.0
  %1092 = vmatprep.subr.mxu0 0.0
  %1093 = vmatpush1.msra.mxu0 0.0
  %1094 = vmatprep.subr.mxu0 0.0
  %1095 = vmatpush1.msra.mxu0 0.0
  %1096 = vmatprep.subr.mxu0 0.0
  %1097 = vmatpush1.msra.mxu0 0.0
  %1098 = vmatprep.subr.mxu0 0.0
  %1099 = vmatpush1.msra.mxu0 0.0
  %1100 = vmatprep.subr.mxu0 0.0
  %1101 = vmatpush1.msra.mxu0 0.0
  %1102 = vmatprep.subr.mxu0 0.0
  %1103 = vmatpush1.msra.mxu0 0.0
  %1104 = vmatprep.subr.mxu0 0.0
  %1105 = vmatpush1.msra.mxu0 %v38
  %1106 = vmatprep.subr.mxu0 0.0
  %1107 = vmatpush1.msra.mxu0 %v37
  %1108 = vmatprep.subr.mxu0 0.0
  %1109 = vmatpush1.msra.mxu0 %v36
  %1110 = vmatprep.subr.mxu0 0.0
  %1111 = vmatpush1.msra.mxu0 %v35
  %1112 = vmatprep.subr.mxu0 0.0
  %1113 = vmatpush2.msra.mxu0 0.0
  %1114 = vmatprep.subr.mxu0 0.0
  %1115 = vmatpush2.msra.mxu0 0.0
  %1116 = vmatprep.subr.mxu0 0.0
  %1117 = vmatpush2.msra.mxu0 0.0
  %1118 = vmatprep.subr.mxu0 0.0
  %1119 = vmatpush2.msra.mxu0 0.0
  %1120 = vmatprep.subr.mxu0 0.0
  %1121 = vmatpush2.msra.mxu0 0.0
  %1122 = vmatprep.subr.mxu0 0.0
  %1123 = vmatpush2.msra.mxu0 0.0
  %1124 = vmatprep.subr.mxu0 0.0
  %1125 = vmatpush2.msra.mxu0 0.0
  %1126 = vmatprep.subr.mxu0 0.0
  %1127 = vmatpush2.msra.mxu0 0.0
  %1128 = vmatprep.subr.mxu0 0.0
  %1129 = vmatpush2.msra.mxu0 0.0
  %1130 = vmatprep.subr.mxu0 0.0
  %1131 = vmatpush2.msra.mxu0 0.0
  %1132 = vmatprep.subr.mxu0 0.0
  %1133 = vmatpush2.msra.mxu0 0.0
  %1134 = vmatprep.subr.mxu0 0.0
  %1135 = vmatpush2.msra.mxu0 0.0
  %1136 = vmatprep.subr.mxu0 0.0
  %1137 = vmatpush2.msra.mxu0 0.0
  %1138 = vmatprep.subr.mxu0 0.0
  %1139 = vmatpush2.msra.mxu0 0.0
  %1140 = vmatprep.subr.mxu0 0.0
  %1141 = vmatpush2.msra.mxu0 0.0
  %1142 = vmatprep.subr.mxu0 0.0
  %1143 = vmatpush2.msra.mxu0 0.0
  %1144 = vmatprep.mubr.f32.mxu0 0.0
  %1145 = vmatmul.mubr.f32.gmra.mxu0 %v1078
  %v1146 = vpop.f32.mrf.mxu0
  %v1147 = vadd.f32 %v1076, %v1146
  %v1148 = vpop.f32.mrf.mxu0
  %1149 = vdwg.mxu0
  %v1150 = vmax.f32 %v1147, 0.0
  %v1151 = vpack.c.bf16 %v1150, %v1150
  %v1152 = vld [vmem:[%s2] sm:$0xff]
  %v1153 = vld [vmem:[%s2 + $0x8] sm:$0xff]
  %v1154 = vld [vmem:[%s2 + $0x10] sm:$0xff]
  %v1155 = vld [vmem:[%s2 + $0x18] sm:$0xff]
  %v1156 = vld [vmem:[%s2 + $0x20] sm:$0xff]
  %v1157 = vld [vmem:[%s2 + $0x28] sm:$0xff]
  %v1158 = vld [vmem:[%s2 + $0x30] sm:$0xff]
  %v1159 = vld [vmem:[%s2 + $0x38] sm:$0xff]
  %v1160 = vld [vmem:[%s2 + $0x40] sm:$0xff]
  %v1161 = vld [vmem:[%s2 + $0x48] sm:$0xff]
  %v1162 = vld [vmem:[%s2 + $0x50] sm:$0xff]
  %v1163 = vld [vmem:[%s2 + $0x58] sm:$0xff]
  %v1164 = vld [vmem:[%s2 + $0x60] sm:$0xff]
  %v1165 = vld [vmem:[%s2 + $0x68] sm:$0xff]
  %v1166 = vld [vmem:[%s2 + $0x70] sm:$0xff]
  %v1167 = vld [vmem:[%s2 + $0x78] sm:$0xff]
  %v1168 = vld [vmem:[%s4] sm:$0xff]
  %v1170 = vlaneseq
  %v1171 = vshrl.u32 %v1170, 7
  %v1172 = vsub.s32 0, %v1171
  %v1173 = vrot.slane %v1168, %v1172
  %v1174 = vlaneseq
  %v1175 = vshrl.u32 %v1174, 7
  %v1176 = vsub.s32 1, %v1175
  %v1177 = vrot.slane %v1168, %v1176
  %v1178 = vlaneseq
  %v1179 = vshrl.u32 %v1178, 7
  %v1180 = vsub.s32 2, %v1179
  %v1181 = vrot.slane %v1168, %v1180
  %v1182 = vlaneseq
  %v1183 = vshrl.u32 %v1182, 7
  %v1184 = vsub.s32 3, %v1183
  %v1185 = vrot.slane %v1168, %v1184
  %v1186 = vlaneseq
  %v1187 = vshrl.u32 %v1186, 7
  %v1188 = vsub.s32 4, %v1187
  %v1189 = vrot.slane %v1168, %v1188
  %v1190 = vlaneseq
  %v1191 = vshrl.u32 %v1190, 7
  %v1192 = vsub.s32 5, %v1191
  %v1193 = vrot.slane %v1168, %v1192
  %v1194 = vlaneseq
  %v1195 = vshrl.u32 %v1194, 7
  %v1196 = vsub.s32 6, %v1195
  %v1197 = vrot.slane %v1168, %v1196
  %v1198 = vlaneseq
  %v1199 = vshrl.u32 %v1198, 7
  %v1200 = vsub.s32 7, %v1199
  %v1201 = vrot.slane %v1168, %v1200
  %v1226 = vunpack.c.l.b16 %v1152
  %v1227 = vunpack.c.h.b16 %v1152
  %v1228 = vunpack.c.l.b16 %v1153
  %v1229 = vunpack.c.h.b16 %v1153
  %v1230 = vunpack.c.l.b16 %v1154
  %v1231 = vunpack.c.h.b16 %v1154
  %v1232 = vunpack.c.l.b16 %v1155
  %v1233 = vunpack.c.h.b16 %v1155
  %v1234 = vunpack.c.l.b16 %v1156
  %v1235 = vunpack.c.h.b16 %v1156
  %v1236 = vunpack.c.l.b16 %v1157
  %v1237 = vunpack.c.h.b16 %v1157
  %v1238 = vunpack.c.l.b16 %v1158
  %v1239 = vunpack.c.h.b16 %v1158
  %v1240 = vunpack.c.l.b16 %v1159
  %v1241 = vunpack.c.h.b16 %v1159
  %v1242 = vunpack.c.l.b16 %v1160
  %v1243 = vunpack.c.h.b16 %v1160
  %v1244 = vunpack.c.l.b16 %v1161
  %v1245 = vunpack.c.h.b16 %v1161
  %v1246 = vunpack.c.l.b16 %v1162
  %v1247 = vunpack.c.h.b16 %v1162
  %v1248 = vunpack.c.l.b16 %v1163
  %v1249 = vunpack.c.h.b16 %v1163
  %v1250 = vunpack.c.l.b16 %v1164
  %v1251 = vunpack.c.h.b16 %v1164
  %v1252 = vunpack.c.l.b16 %v1165
  %v1253 = vunpack.c.h.b16 %v1165
  %v1254 = vunpack.c.l.b16 %v1166
  %v1255 = vunpack.c.h.b16 %v1166
  %v1256 = vunpack.c.l.b16 %v1167
  %v1257 = vunpack.c.h.b16 %v1167
  %v1258 = vpack.c.b16 %v1234, %v1226
  %v1259 = vpack.c.b16 %v1235, %v1227
  %v1260 = vpack.c.b16 %v1236, %v1228
  %v1261 = vpack.c.b16 %v1237, %v1229
  %v1262 = vpack.c.b16 %v1238, %v1230
  %v1263 = vpack.c.b16 %v1239, %v1231
  %v1264 = vpack.c.b16 %v1240, %v1232
  %v1265 = vpack.c.b16 %v1241, %v1233
  %v1266 = vpack.c.b16 %v1250, %v1242
  %v1267 = vpack.c.b16 %v1251, %v1243
  %v1268 = vpack.c.b16 %v1252, %v1244
  %v1269 = vpack.c.b16 %v1253, %v1245
  %v1270 = vpack.c.b16 %v1254, %v1246
  %v1271 = vpack.c.b16 %v1255, %v1247
  %v1272 = vpack.c.b16 %v1256, %v1248
  %v1273 = vpack.c.b16 %v1257, %v1249
  %v1291 = vsel %vm755, %v1151, 0
  %1293 = vmatprep.subr.bf16.mxu0 0
  %1294 = vmatpush1.bf16.msra.mxu0 0
  %1295 = vmatprep.subr.bf16.mxu0 0
  %1296 = vmatpush1.bf16.msra.mxu0 0
  %1297 = vmatprep.subr.bf16.mxu0 0
  %1298 = vmatpush1.bf16.msra.mxu0 0
  %1299 = vmatprep.subr.bf16.mxu0 0
  %1300 = vmatpush1.bf16.msra.mxu0 0
  %1301 = vmatprep.subr.bf16.mxu0 0
  %1302 = vmatpush1.bf16.msra.mxu0 0
  %1303 = vmatprep.subr.bf16.mxu0 0
  %1304 = vmatpush1.bf16.msra.mxu0 0
  %1305 = vmatprep.subr.bf16.mxu0 %v1267
  %1306 = vmatpush1.bf16.msra.mxu0 %v1266
  %1307 = vmatprep.subr.bf16.mxu0 %v1259
  %1308 = vmatpush1.bf16.msra.mxu0 %v1258
  %1309 = vmatprep.subr.bf16.mxu0 0
  %1310 = vmatpush2.bf16.msra.mxu0 0
  %1311 = vmatprep.subr.bf16.mxu0 0
  %1312 = vmatpush2.bf16.msra.mxu0 0
  %1313 = vmatprep.subr.bf16.mxu0 0
  %1314 = vmatpush2.bf16.msra.mxu0 0
  %1315 = vmatprep.subr.bf16.mxu0 0
  %1316 = vmatpush2.bf16.msra.mxu0 0
  %1317 = vmatprep.subr.bf16.mxu0 0
  %1318 = vmatpush2.bf16.msra.mxu0 0
  %1319 = vmatprep.subr.bf16.mxu0 0
  %1320 = vmatpush2.bf16.msra.mxu0 0
  %1321 = vmatprep.subr.bf16.mxu0 0
  %1322 = vmatpush2.bf16.msra.mxu0 0
  %1323 = vmatprep.subr.bf16.mxu0 0
  %1324 = vmatpush2.bf16.msra.mxu0 0
  %1325 = vmatprep.mubr.bf16.mxu0 0
  %1326 = vmatmul.mubr.bf16.gmra.mxu0 %v1291
  %v1327 = vpop.f32.mrf.mxu0
  %v1328 = vadd.f32 %v1173, %v1327
  %v1329 = vpop.f32.mrf.mxu0
  %v1330 = vadd.f32 %v1177, %v1329
  %v1331 = vpop.f32.mrf.mxu0
  %v1332 = vpop.f32.mrf.mxu0
  %1333 = vdwg.mxu0
  %1334 = vmatprep.subr.bf16.mxu0 0
  %1335 = vmatpush1.bf16.msra.mxu0 0
  %1336 = vmatprep.subr.bf16.mxu0 0
  %1337 = vmatpush1.bf16.msra.mxu0 0
  %1338 = vmatprep.subr.bf16.mxu0 0
  %1339 = vmatpush1.bf16.msra.mxu0 0
  %1340 = vmatprep.subr.bf16.mxu0 0
  %1341 = vmatpush1.bf16.msra.mxu0 0
  %1342 = vmatprep.subr.bf16.mxu0 0
  %1343 = vmatpush1.bf16.msra.mxu0 0
  %1344 = vmatprep.subr.bf16.mxu0 0
  %1345 = vmatpush1.bf16.msra.mxu0 0
  %1346 = vmatprep.subr.bf16.mxu0 %v1269
  %1347 = vmatpush1.bf16.msra.mxu0 %v1268
  %1348 = vmatprep.subr.bf16.mxu0 %v1261
  %1349 = vmatpush1.bf16.msra.mxu0 %v1260
  %1350 = vmatprep.subr.bf16.mxu0 0
  %1351 = vmatpush2.bf16.msra.mxu0 0
  %1352 = vmatprep.subr.bf16.mxu0 0
  %1353 = vmatpush2.bf16.msra.mxu0 0
  %1354 = vmatprep.subr.bf16.mxu0 0
  %1355 = vmatpush2.bf16.msra.mxu0 0
  %1356 = vmatprep.subr.bf16.mxu0 0
  %1357 = vmatpush2.bf16.msra.mxu0 0
  %1358 = vmatprep.subr.bf16.mxu0 0
  %1359 = vmatpush2.bf16.msra.mxu0 0
  %1360 = vmatprep.subr.bf16.mxu0 0
  %1361 = vmatpush2.bf16.msra.mxu0 0
  %1362 = vmatprep.subr.bf16.mxu0 0
  %1363 = vmatpush2.bf16.msra.mxu0 0
  %1364 = vmatprep.subr.bf16.mxu0 0
  %1365 = vmatpush2.bf16.msra.mxu0 0
  %1366 = vmatprep.mubr.bf16.mxu0 0
  %1367 = vmatmul.mubr.bf16.gmra.mxu0 %v1291
  %v1368 = vpop.f32.mrf.mxu0
  %v1369 = vadd.f32 %v1181, %v1368
  %v1370 = vpop.f32.mrf.mxu0
  %v1371 = vadd.f32 %v1185, %v1370
  %v1372 = vpop.f32.mrf.mxu0
  %v1373 = vpop.f32.mrf.mxu0
  %1374 = vdwg.mxu0
  %1375 = vmatprep.subr.bf16.mxu0 0
  %1376 = vmatpush1.bf16.msra.mxu0 0
  %1377 = vmatprep.subr.bf16.mxu0 0
  %1378 = vmatpush1.bf16.msra.mxu0 0
  %1379 = vmatprep.subr.bf16.mxu0 0
  %1380 = vmatpush1.bf16.msra.mxu0 0
  %1381 = vmatprep.subr.bf16.mxu0 0
  %1382 = vmatpush1.bf16.msra.mxu0 0
  %1383 = vmatprep.subr.bf16.mxu0 0
  %1384 = vmatpush1.bf16.msra.mxu0 0
  %1385 = vmatprep.subr.bf16.mxu0 0
  %1386 = vmatpush1.bf16.msra.mxu0 0
  %1387 = vmatprep.subr.bf16.mxu0 %v1271
  %1388 = vmatpush1.bf16.msra.mxu0 %v1270
  %1389 = vmatprep.subr.bf16.mxu0 %v1263
  %1390 = vmatpush1.bf16.msra.mxu0 %v1262
  %1391 = vmatprep.subr.bf16.mxu0 0
  %1392 = vmatpush2.bf16.msra.mxu0 0
  %1393 = vmatprep.subr.bf16.mxu0 0
  %1394 = vmatpush2.bf16.msra.mxu0 0
  %1395 = vmatprep.subr.bf16.mxu0 0
  %1396 = vmatpush2.bf16.msra.mxu0 0
  %1397 = vmatprep.subr.bf16.mxu0 0
  %1398 = vmatpush2.bf16.msra.mxu0 0
  %1399 = vmatprep.subr.bf16.mxu0 0
  %1400 = vmatpush2.bf16.msra.mxu0 0
  %1401 = vmatprep.subr.bf16.mxu0 0
  %1402 = vmatpush2.bf16.msra.mxu0 0
  %1403 = vmatprep.subr.bf16.mxu0 0
  %1404 = vmatpush2.bf16.msra.mxu0 0
  %1405 = vmatprep.subr.bf16.mxu0 0
  %1406 = vmatpush2.bf16.msra.mxu0 0
  %1407 = vmatprep.mubr.bf16.mxu0 0
  %1408 = vmatmul.mubr.bf16.gmra.mxu0 %v1291
  %v1409 = vpop.f32.mrf.mxu0
  %v1410 = vadd.f32 %v1189, %v1409
  %v1411 = vpop.f32.mrf.mxu0
  %v1412 = vadd.f32 %v1193, %v1411
  %v1413 = vpop.f32.mrf.mxu0
  %v1414 = vpop.f32.mrf.mxu0
  %1415 = vdwg.mxu0
  %1416 = vmatprep.subr.bf16.mxu0 0
  %1417 = vmatpush1.bf16.msra.mxu0 0
  %1418 = vmatprep.subr.bf16.mxu0 0
  %1419 = vmatpush1.bf16.msra.mxu0 0
  %1420 = vmatprep.subr.bf16.mxu0 0
  %1421 = vmatpush1.bf16.msra.mxu0 0
  %1422 = vmatprep.subr.bf16.mxu0 0
  %1423 = vmatpush1.bf16.msra.mxu0 0
  %1424 = vmatprep.subr.bf16.mxu0 0
  %1425 = vmatpush1.bf16.msra.mxu0 0
  %1426 = vmatprep.subr.bf16.mxu0 0
  %1427 = vmatpush1.bf16.msra.mxu0 0
  %1428 = vmatprep.subr.bf16.mxu0 %v1273
  %1429 = vmatpush1.bf16.msra.mxu0 %v1272
  %1430 = vmatprep.subr.bf16.mxu0 %v1265
  %1431 = vmatpush1.bf16.msra.mxu0 %v1264
  %1432 = vmatprep.subr.bf16.mxu0 0
  %1433 = vmatpush2.bf16.msra.mxu0 0
  %1434 = vmatprep.subr.bf16.mxu0 0
  %1435 = vmatpush2.bf16.msra.mxu0 0
  %1436 = vmatprep.subr.bf16.mxu0 0
  %1437 = vmatpush2.bf16.msra.mxu0 0
  %1438 = vmatprep.subr.bf16.mxu0 0
  %1439 = vmatpush2.bf16.msra.mxu0 0
  %1440 = vmatprep.subr.bf16.mxu0 0
  %1441 = vmatpush2.bf16.msra.mxu0 0
  %1442 = vmatprep.subr.bf16.mxu0 0
  %1443 = vmatpush2.bf16.msra.mxu0 0
  %1444 = vmatprep.subr.bf16.mxu0 0
  %1445 = vmatpush2.bf16.msra.mxu0 0
  %1446 = vmatprep.subr.bf16.mxu0 0
  %1447 = vmatpush2.bf16.msra.mxu0 0
  %1448 = vmatprep.mubr.bf16.mxu0 0
  %1449 = vmatmul.mubr.bf16.gmra.mxu0 %v1291
  %v1450 = vpop.f32.mrf.mxu0
  %v1451 = vadd.f32 %v1197, %v1450
  %v1452 = vpop.f32.mrf.mxu0
  %v1453 = vadd.f32 %v1201, %v1452
  %v1454 = vpop.f32.mrf.mxu0
  %v1455 = vpop.f32.mrf.mxu0
  %1456 = vdwg.mxu0
  %v1457 = vxor.u32 %v1328, 2147483648
  %v1458 = vxor.u32 %v1330, 2147483648
  %v1459 = vxor.u32 %v1369, 2147483648
  %v1460 = vxor.u32 %v1371, 2147483648
  %v1461 = vxor.u32 %v1410, 2147483648
  %v1462 = vxor.u32 %v1412, 2147483648
  %v1463 = vxor.u32 %v1451, 2147483648
  %v1464 = vxor.u32 %v1453, 2147483648
  %v1465 = vmul.f32 %v1457, 1.442695
  %v1466 = vpow.pop %v1465
  %v1467 = vmul.f32 %v1458, 1.442695
  %v1468 = vpow.pop %v1467
  %v1469 = vmul.f32 %v1459, 1.442695
  %v1470 = vpow.pop %v1469
  %v1471 = vmul.f32 %v1460, 1.442695
  %v1472 = vpow.pop %v1471
  %v1473 = vmul.f32 %v1461, 1.442695
  %v1474 = vpow.pop %v1473
  %v1475 = vmul.f32 %v1462, 1.442695
  %v1476 = vpow.pop %v1475
  %v1477 = vmul.f32 %v1463, 1.442695
  %v1478 = vpow.pop %v1477
  %v1479 = vmul.f32 %v1464, 1.442695
  %v1480 = vpow.pop %v1479
  %v1481 = vadd.f32 %v1466, 1.0
  %v1482 = vadd.f32 %v1468, 1.0
  %v1483 = vadd.f32 %v1470, 1.0
  %v1484 = vadd.f32 %v1472, 1.0
  %v1485 = vadd.f32 %v1474, 1.0
  %v1486 = vadd.f32 %v1476, 1.0
  %v1487 = vadd.f32 %v1478, 1.0
  %v1488 = vadd.f32 %v1480, 1.0
  %v1489 = vrcp.pop %v1481
  %v1490 = vmul.f32 1.0, %v1489
  %v1491 = vrcp.pop %v1482
  %v1492 = vmul.f32 1.0, %v1491
  %v1493 = vrcp.pop %v1483
  %v1494 = vmul.f32 1.0, %v1493
  %v1495 = vrcp.pop %v1484
  %v1496 = vmul.f32 1.0, %v1495
  %v1497 = vrcp.pop %v1485
  %v1498 = vmul.f32 1.0, %v1497
  %v1499 = vrcp.pop %v1486
  %v1500 = vmul.f32 1.0, %v1499
  %v1501 = vrcp.pop %v1487
  %v1502 = vmul.f32 1.0, %v1501
  %v1503 = vrcp.pop %v1488
  %v1504 = vmul.f32 1.0, %v1503
  %1505 = vst [vmem:[%s5] sm:$0xff] %v1490
  %1506 = vst [vmem:[%s5 + $0x8] sm:$0xff] %v1492
  %1507 = vst [vmem:[%s5 + $0x10] sm:$0xff] %v1494
  %1508 = vst [vmem:[%s5 + $0x18] sm:$0xff] %v1496
  %1509 = vst [vmem:[%s5 + $0x20] sm:$0xff] %v1498
  %1510 = vst [vmem:[%s5 + $0x28] sm:$0xff] %v1500
  %1511 = vst [vmem:[%s5 + $0x30] sm:$0xff] %v1502
  %1512 = vst [vmem:[%s5 + $0x38] sm:$0xff] %v1504
  // Predicated region
  $region22: #{vae_forward.1} parent=0 // pred_check
    _
  $region23: #{vae_forward.1} parent=0 // pred_check_branch
    %1514 = sbr.rel (0) target = $region25
  $region24: #{vae_forward.1} parent=0 // pred_region
    _
  $region25: #{vae_forward.1} parent=0 // pred_fallthru
    _
  // Predicated region
  $region26: #{vae_forward.1} parent=0 // pred_check
    _
  $region27: #{vae_forward.1} parent=0 // pred_check_branch
    %1516 = sbr.rel (0) target = $region29
  $region28: #{vae_forward.1} parent=0 // pred_region
    _
  $region29: #{vae_forward.1} parent=0 // pred_fallthru
    _
  // Predicated region
  $region30: #{vae_forward.1} parent=0 // pred_check
    _
  $region31: #{vae_forward.1} parent=0 // pred_check_branch
    %1518 = sbr.rel (0) target = $region33
  $region32: #{vae_forward.1} parent=0 // pred_region
    _
  $region33: #{vae_forward.1} parent=0 // pred_fallthru
    _
  // Predicated region
  $region34: #{vae_forward.1} parent=0 // pred_check
    _
  $region35: #{vae_forward.1} parent=0 // pred_check_branch
    %1520 = sbr.rel (0) target = $region37
  $region36: #{vae_forward.1} parent=0 // pred_region
    _
  $region37: #{vae_forward.1} parent=0 // pred_fallthru
    _

</llo_original>
